<compile_context>
chip_gen: v6e
topology: v6e:2x2x1
jax: 0.10.0
libtpu: 0.0.40
codegen_flags: <defaults>
</compile_context>

<pallas_src>
import jax
import jax.numpy as jnp
from jax import lax
from jax.experimental import pallas as pl
from jax.experimental.pallas import tpu as pltpu

BN_EPS = 1e-5
_BLOCK_BYTES = 2 * 1024 * 1024        # per-block cap (~2 MiB) -> VMEM-safe on v7x
_VMEM_LIMIT = 32 * 1024 * 1024        # explicit scoped-VMEM limit (safe on all chips)


def _pick_tile(dim, max_tile, quantum=8):
    """Largest divisor of `dim` that is a multiple of `quantum` and <= max_tile.

    Falls back to the full dim (always a legal block) when no such divisor
    exists (e.g. c=4 in the demo shapes).
    """
    best = 0
    t = quantum
    lim = min(dim, max_tile)
    while t <= lim:
        if dim % t == 0:
            best = t
        t += quantum
    return best if best > 0 else dim


# ---------------------------------------------------------------------------
# Kernel 1: both strip convolutions from a single NCHW tile of x.
#   x block  : (1, tc, th, w) f32   (cast to bf16 in-kernel for the MXU)
#   wv block : (tc*w, c_out)  bf16  (conv_v weight, rows (c_in, w)-major)
#   wh block : (tc, th, c_out) f32  (conv_h weight slice)
#   yv out   : (1, th, c_out) f32   accumulated over the c_in grid axis
#   yh out   : (1, w,  c_out) f32   accumulated over the h and c_in grid axes
# ---------------------------------------------------------------------------
def _strip_conv_kernel(x_ref, wv_ref, wh_ref, yv_ref, yh_ref):
    hi = pl.program_id(1)            # h-tile index     (reduction axis for conv_h)
    ci = pl.program_id(2)            # c_in-tile index  (reduction axis for both)
    xb = x_ref[0]                    # (tc, th, w) f32
    tc, th, w = xb.shape
    c_out = wv_ref.shape[1]

    # conv_h partial: ONE GEMM, K = tc*th.  (tc,th,w)->(tc*th,w) is a free
    # leading-dim collapse (th is a multiple of 8 / the full h); row order
    # (c_in, h) matches the (c_in, h, c_out) weight tile collapsed the same way.
    x_rows = xb.reshape(tc * th, w).astype(jnp.bfloat16)
    wh2 = wh_ref[...].reshape(tc * th, c_out).astype(jnp.bfloat16)
    part_h = lax.dot_general(x_rows, wh2, (((0,), (0,)), ((), ())),
                             preferred_element_type=jnp.float32)        # (w, c_out)

    # conv_v partial: ONE GEMM, K = tc*w.  Build the (th, tc*w) operand with a
    # lane concat over the few (<=16) input channels of this tile; column order
    # (c_in, w) matches the pre-flattened (c_in*w, c_out) weight rows.
    x_cols = jnp.concatenate([xb[i] for i in range(tc)],
                             axis=-1).astype(jnp.bfloat16)              # (th, tc*w)
    part_v = jnp.dot(x_cols, wv_ref[...],
                     preferred_element_type=jnp.float32)                # (th, c_out)

    # yv block (bi, hi) stays resident across the inner c_in axis.
    @pl.when(ci == 0)
    def _():
        yv_ref[0] = part_v

    @pl.when(ci > 0)
    def _():
        yv_ref[0] += part_v

    # yh block (bi) stays resident across both the h and c_in axes.
    first = (hi == 0) & (ci == 0)

    @pl.when(first)
    def _():
        yh_ref[0] = part_h

    @pl.when(jnp.logical_not(first))
    def _():
        yh_ref[0] += part_h


def strip_convs(x, wv_2d, wh_3d):
    """Raw (pre-BN) strip convolutions.  Returns yv:(b,h,c), yh:(b,w,c) f32."""
    b, c, h, w = x.shape
    tc = _pick_tile(c, max(8, _BLOCK_BYTES // (h * w * 4)))
    th = _pick_tile(h, max(8, _BLOCK_BYTES // (tc * w * 4)))
    grid = (b, h // th, c // tc)
    return pl.pallas_call(
        _strip_conv_kernel,
        out_shape=(jax.ShapeDtypeStruct((b, h, c), jnp.float32),
                   jax.ShapeDtypeStruct((b, w, c), jnp.float32)),
        grid=grid,
        in_specs=[
            pl.BlockSpec((1, tc, th, w), lambda bi, hi, ci: (bi, ci, hi, 0)),
            pl.BlockSpec((tc * w, c), lambda bi, hi, ci: (ci, 0)),
            pl.BlockSpec((tc, th, c), lambda bi, hi, ci: (ci, hi, 0)),
        ],
        out_specs=(pl.BlockSpec((1, th, c), lambda bi, hi, ci: (bi, hi, 0)),
                   pl.BlockSpec((1, w, c), lambda bi, hi, ci: (bi, 0, 0))),
        compiler_params=pltpu.CompilerParams(
            dimension_semantics=("parallel", "arbitrary", "arbitrary"),
            vmem_limit_bytes=_VMEM_LIMIT),
    )(x, wv_2d, wh_3d)


# ---------------------------------------------------------------------------
# Kernel 2: fused BN-affine + ReLU + sigmoid gating + combine, lane-dense.
#   out = x * (sigmoid(relu(bn_v(yv))) + sigmoid(relu(bn_h(yh))) + 1)
#   x block: (1, tc, h*w) f32 ; p: (tc,4) = [scale_v, shift_v, scale_h, shift_h]
# ---------------------------------------------------------------------------
def _combine_kernel(x_ref, yv_ref, yh_ref, p_ref, o_ref):
    xb = x_ref[0]                    # (tc, h*w) f32, lane-dense
    sv = yv_ref[0]                   # (tc, h)  raw conv_v
    sh = yh_ref[0]                   # (tc, w)  raw conv_h
    p = p_ref[...]                   # (tc, 4)
    h = sv.shape[1]

    gv = jnp.maximum(sv * p[:, 0:1] + p[:, 1:2], 0.0)          # BN + ReLU, (tc, h)
    gh = jnp.maximum(sh * p[:, 2:3] + p[:, 3:4], 0.0)          # (tc, w)
    # g >= 0 so exp(-g) <= 1 (no overflow); EUP reciprocal; "+1" residual folded in.
    sig_v = pl.reciprocal(1.0 + jnp.exp(-gv), approx=True) + 1.0
    sig_h = pl.reciprocal(1.0 + jnp.exp(-gh), approx=True)

    # Flattened gate, gate[:, hi*w + wi] = sig_v[:, hi] + sig_h[:, wi]:
    # implicit broadcasts + one lane concat (no broadcast_to materialisation).
    gate = jnp.concatenate([sig_v[:, t:t + 1] + sig_h for t in range(h)], axis=-1)
    o_ref[0] = xb * gate


def combine(x_flat, yv_cm, yh_cm, params, *, donate_x=False):
    b, c, hw = x_flat.shape
    h = yv_cm.shape[2]
    w = yh_cm.shape[2]
    tc = _pick_tile(c, max(8, _BLOCK_BYTES // (hw * 4)))
    # TODO(synk): if c is too small to tile while h*w is huge, add an h*w tile axis here.
    grid = (b, c // tc)
    return pl.pallas_call(
        _combine_kernel,
        out_shape=jax.ShapeDtypeStruct((b, c, hw), x_flat.dtype),
        grid=grid,
        in_specs=[
            pl.BlockSpec((1, tc, hw), lambda bi, ci: (bi, ci, 0)),
            pl.BlockSpec((1, tc, h), lambda bi, ci: (bi, ci, 0)),
            pl.BlockSpec((1, tc, w), lambda bi, ci: (bi, ci, 0)),
            pl.BlockSpec((tc, 4), lambda bi, ci: (ci, 0)),
        ],
        out_specs=pl.BlockSpec((1, tc, hw), lambda bi, ci: (bi, ci, 0)),
        compiler_params=pltpu.CompilerParams(
            dimension_semantics=("parallel", "parallel"),
            vmem_limit_bytes=_VMEM_LIMIT),
        # Only alias x -> out when the caller no longer needs x (saves an HBM buffer).
        input_output_aliases=({0: 0} if donate_x else {}),
    )(x_flat, yv_cm, yh_cm, params)


# ---------------------------------------------------------------------------
# Wrapper: OIPModule.forward  (x is NCHW, like PyTorch)
# ---------------------------------------------------------------------------
def oip_forward(x, wv, wh, gamma_v, beta_v, gamma_h, beta_h, *, donate_x=False):
    """x:(b,c,h,w) f32.  wv:(c,c,1,w), wh:(c,c,h,1) conv weights (bias=False)."""
    b, c, h, w = x.shape
    # Tiny weight relayouts only (c*c*w / c*c*h elements); x itself is never relaid out.
    wv_2d = jnp.transpose(wv[:, :, 0, :], (1, 2, 0)).reshape(c * w, c).astype(jnp.bfloat16)
    wh_3d = jnp.transpose(wh[:, :, :, 0], (1, 2, 0))                  # (c_in, h, c_out)

    yv_raw, yh_raw = strip_convs(x, wv_2d, wh_3d)                     # (b,h,c), (b,w,c)

    # Training-mode BatchNorm statistics: GLOBAL over the batch (matches PyTorch,
    # biased variance), computed on the tiny conv maps and folded into one
    # per-channel scale/shift pair per branch for the combine kernel.
    # TODO(synk): running_mean/running_var buffer updates (a PyTorch training
    # side effect) are not emitted; mv/vv/mh/vh are available here if needed.
    mv = jnp.mean(yv_raw, axis=(0, 1))
    vv = jnp.var(yv_raw, axis=(0, 1))
    mh = jnp.mean(yh_raw, axis=(0, 1))
    vh = jnp.var(yh_raw, axis=(0, 1))
    scale_v = gamma_v * lax.rsqrt(vv + BN_EPS)
    shift_v = beta_v - mv * scale_v
    scale_h = gamma_h * lax.rsqrt(vh + BN_EPS)
    shift_h = beta_h - mh * scale_h
    params = jnp.stack([scale_v, shift_v, scale_h, shift_h], axis=1)  # (c, 4)

    # Tiny transposes to channel-major for the gating kernel (a few KiB).
    yv_cm = jnp.transpose(yv_raw, (0, 2, 1))                          # (b, c, h)
    yh_cm = jnp.transpose(yh_raw, (0, 2, 1))                          # (b, c, w)

    out_flat = combine(x.reshape(b, c, h * w), yv_cm, yh_cm, params, donate_x=donate_x)
    return out_flat.reshape(b, c, h, w)


# ---------------------------------------------------------------------------
# Pure-JAX f32 reference (mirrors the PyTorch forward, training-mode BN)
# ---------------------------------------------------------------------------
def reference(x, wv, wh, gamma_v, beta_v, gamma_h, beta_h):
    def bn_relu(y, gamma, beta):
        mean = y.mean(axis=(0, 2, 3), keepdims=True)
        var = ((y - mean) ** 2).mean(axis=(0, 2, 3), keepdims=True)
        y = (y - mean) / jnp.sqrt(var + BN_EPS)
        y = y * gamma.reshape(1, -1, 1, 1) + beta.reshape(1, -1, 1, 1)
        return jnp.maximum(y, 0.0)

    dn = ("NCHW", "OIHW", "NCHW")
    yv = lax.conv_general_dilated(x, wv, (1, 1), "VALID", dimension_numbers=dn)
    yh = lax.conv_general_dilated(x, wh, (1, 1), "VALID", dimension_numbers=dn)
    yv = bn_relu(yv, gamma_v, beta_v)
    yh = bn_relu(yh, gamma_h, beta_h)
    xv = jax.nn.sigmoid(jnp.broadcast_to(yv, x.shape)) * x
    xh = jax.nn.sigmoid(jnp.broadcast_to(yh, x.shape)) * x
    return xv + xh + x


if __name__ == "__main__":
    key = jax.random.PRNGKey(0)
    b, c, h, w = 2, 4, 16, 16
    k1, k2, k3 = jax.random.split(key, 3)

    x = jax.random.normal(k1, (b, c, h, w), jnp.float32)
    # conv_v weight: (out_c, in_c, 1, w); conv_h weight: (out_c, in_c, h, 1); bias=False
    wv = jax.random.normal(k2, (c, c, 1, w), jnp.float32) * 0.1
    wh = jax.random.normal(k3, (c, c, h, 1), jnp.float32) * 0.1
    # BatchNorm affine params at PyTorch init: weight=1, bias=0
    gv = jnp.ones((c,), jnp.float32)
    bv = jnp.zeros((c,), jnp.float32)
    gh = jnp.ones((c,), jnp.float32)
    bh = jnp.zeros((c,), jnp.float32)
    # NOTE: OIPModule.self.bn is constructed lazily but never used in forward.

    fwd = jax.jit(oip_forward)
    out = fwd(x, wv, wh, gv, bv, gh, bh)
    jax.block_until_ready(out)

    ref = reference(x, wv, wh, gv, bv, gh, bh)
    assert out.shape == (b, c, h, w)
    # Tolerance accounts for bf16 MXU operands (f32 accumulation) feeding the BN
    # statistics and the approximate EUP reciprocal in the sigmoid.
    assert jnp.allclose(out, ref, atol=2e-2, rtol=2e-2), float(jnp.abs(out - ref).max())
    print("KERNEL_OK")
</pallas_src>

<mosaic_0001>
module attributes {stable_mosaic.version = 11 : i64} {
  func.func @_strip_conv_kernel(%arg0: i32, %arg1: i32, %arg2: i32, %arg3: memref<1x4x16x16xf32, #tpu.memory_space<vmem>>, %arg4: memref<64x4xbf16, #tpu.memory_space<vmem>>, %arg5: memref<4x16x4xf32, #tpu.memory_space<vmem>>, %arg6: memref<1x16x4xf32, #tpu.memory_space<vmem>>, %arg7: memref<1x16x4xf32, #tpu.memory_space<vmem>>) attributes {dimension_semantics = [#tpu.dimension_semantics<parallel>, #tpu.dimension_semantics<arbitrary>, #tpu.dimension_semantics<arbitrary>], iteration_bounds = array<i64: 2, 1, 1>, scalar_prefetch = 0 : i64, scratch_operands = 0 : i64, tpu.core_type = #tpu.core_type<tc>, window_params = [{transform_indices = @transform_0, window_bounds = array<i64: 1, 4, 16, 16>}, {transform_indices = @transform_1, window_bounds = array<i64: 64, 4>}, {transform_indices = @transform_2, window_bounds = array<i64: 4, 16, 4>}, {transform_indices = @transform_3, window_bounds = array<i64: 1, 16, 4>}, {transform_indices = @transform_4, window_bounds = array<i64: 1, 16, 4>}]} {
    %c0 = arith.constant 0 : index
    %c0_0 = arith.constant 0 : index
    %c0_1 = arith.constant 0 : index
    %c0_2 = arith.constant 0 : index
    %0 = vector.load %arg3[%c0, %c0_0, %c0_1, %c0_2] : memref<1x4x16x16xf32, #tpu.memory_space<vmem>>, vector<1x4x16x16xf32>
    %1 = vector.shape_cast %0 : vector<1x4x16x16xf32> to vector<4x16x16xf32>
    %2 = vector.shape_cast %1 : vector<4x16x16xf32> to vector<64x16xf32>
    %3 = arith.truncf %2 : vector<64x16xf32> to vector<64x16xbf16>
    %c0_3 = arith.constant 0 : index
    %c0_4 = arith.constant 0 : index
    %c0_5 = arith.constant 0 : index
    %4 = vector.load %arg5[%c0_3, %c0_4, %c0_5] : memref<4x16x4xf32, #tpu.memory_space<vmem>>, vector<4x16x4xf32>
    %5 = vector.shape_cast %4 : vector<4x16x4xf32> to vector<64x4xf32>
    %6 = arith.truncf %5 : vector<64x4xf32> to vector<64x4xbf16>
    %cst = arith.constant dense<0.000000e+00> : vector<16x4xf32>
    %7 = tpu.matmul %3, %6, %cst {dimension_numbers = #tpu.dot_dimension_numbers<[0], [0], [1], [1], [0, 1, 1, 1], [], []>} : vector<64x16xbf16>, vector<64x4xbf16>, vector<16x4xf32> -> vector<16x4xf32>
    %8 = vector.extract_strided_slice %1 {offsets = [0, 0, 0], sizes = [1, 16, 16], strides = [1, 1, 1]} : vector<4x16x16xf32> to vector<1x16x16xf32>
    %9 = vector.shape_cast %8 : vector<1x16x16xf32> to vector<16x16xf32>
    %10 = vector.extract_strided_slice %1 {offsets = [1, 0, 0], sizes = [1, 16, 16], strides = [1, 1, 1]} : vector<4x16x16xf32> to vector<1x16x16xf32>
    %11 = vector.shape_cast %10 : vector<1x16x16xf32> to vector<16x16xf32>
    %12 = vector.extract_strided_slice %1 {offsets = [2, 0, 0], sizes = [1, 16, 16], strides = [1, 1, 1]} : vector<4x16x16xf32> to vector<1x16x16xf32>
    %13 = vector.shape_cast %12 : vector<1x16x16xf32> to vector<16x16xf32>
    %14 = vector.extract_strided_slice %1 {offsets = [3, 0, 0], sizes = [1, 16, 16], strides = [1, 1, 1]} : vector<4x16x16xf32> to vector<1x16x16xf32>
    %15 = vector.shape_cast %14 : vector<1x16x16xf32> to vector<16x16xf32>
    %16 = tpu.concatenate %9, %11, %13, %15 in 1 : vector<16x16xf32>, vector<16x16xf32>, vector<16x16xf32>, vector<16x16xf32> -> vector<16x64xf32>
    %17 = arith.truncf %16 : vector<16x64xf32> to vector<16x64xbf16>
    %c0_6 = arith.constant 0 : index
    %c0_7 = arith.constant 0 : index
    %18 = vector.load %arg4[%c0_6, %c0_7] : memref<64x4xbf16, #tpu.memory_space<vmem>>, vector<64x4xbf16>
    %cst_8 = arith.constant dense<0.000000e+00> : vector<16x4xf32>
    %19 = tpu.matmul %17, %18, %cst_8 {dimension_numbers = #tpu.dot_dimension_numbers<[1], [0], [0], [1], [0, 0, 1, 1], [], []>} : vector<16x64xbf16>, vector<64x4xbf16>, vector<16x4xf32> -> vector<16x4xf32>
    %c0_i32 = arith.constant 0 : i32
    %20 = arith.cmpi eq, %arg2, %c0_i32 : i32
    %21 = arith.extui %20 : i1 to i32
    %c0_i32_9 = arith.constant 0 : i32
    %22 = arith.cmpi ne, %21, %c0_i32_9 : i32
    scf.if %22 {
      %c0_16 = arith.constant 0 : index
      %c0_17 = arith.constant 0 : index
      %c0_18 = arith.constant 0 : index
      %34 = vector.load %arg6[%c0_16, %c0_17, %c0_18] : memref<1x16x4xf32, #tpu.memory_space<vmem>>, vector<1x16x4xf32>
      %35 = vector.shape_cast %34 : vector<1x16x4xf32> to vector<16x4xf32>
      %36 = vector.shape_cast %19 : vector<16x4xf32> to vector<1x16x4xf32>
      tpu.vector_store %arg6[%c0_16, %c0_17, %c0_18], %36 {strides = array<i32>} : memref<1x16x4xf32, #tpu.memory_space<vmem>>, vector<1x16x4xf32>,
    } else {
    }
    %c0_i32_10 = arith.constant 0 : i32
    %23 = arith.cmpi sgt, %arg2, %c0_i32_10 : i32
    %24 = arith.extui %23 : i1 to i32
    %c0_i32_11 = arith.constant 0 : i32
    %25 = arith.cmpi ne, %24, %c0_i32_11 : i32
    scf.if %25 {
      %c0_16 = arith.constant 0 : index
      %c0_17 = arith.constant 0 : index
      %c0_18 = arith.constant 0 : index
      %34 = vector.load %arg6[%c0_16, %c0_17, %c0_18] : memref<1x16x4xf32, #tpu.memory_space<vmem>>, vector<1x16x4xf32>
      %35 = vector.shape_cast %34 : vector<1x16x4xf32> to vector<16x4xf32>
      %36 = arith.addf %35, %19 : vector<16x4xf32>
      %c0_19 = arith.constant 0 : index
      %c0_20 = arith.constant 0 : index
      %c0_21 = arith.constant 0 : index
      %37 = vector.load %arg6[%c0_19, %c0_20, %c0_21] : memref<1x16x4xf32, #tpu.memory_space<vmem>>, vector<1x16x4xf32>
      %38 = vector.shape_cast %37 : vector<1x16x4xf32> to vector<16x4xf32>
      %39 = vector.shape_cast %36 : vector<16x4xf32> to vector<1x16x4xf32>
      tpu.vector_store %arg6[%c0_19, %c0_20, %c0_21], %39 {strides = array<i32>} : memref<1x16x4xf32, #tpu.memory_space<vmem>>, vector<1x16x4xf32>,
    } else {
    }
    %c0_i32_12 = arith.constant 0 : i32
    %26 = arith.cmpi eq, %arg1, %c0_i32_12 : i32
    %c0_i32_13 = arith.constant 0 : i32
    %27 = arith.cmpi eq, %arg2, %c0_i32_13 : i32
    %28 = arith.andi %26, %27 : i1
    %29 = arith.extui %28 : i1 to i32
    %c0_i32_14 = arith.constant 0 : i32
    %30 = arith.cmpi ne, %29, %c0_i32_14 : i32
    scf.if %30 {
      %c0_16 = arith.constant 0 : index
      %c0_17 = arith.constant 0 : index
      %c0_18 = arith.constant 0 : index
      %34 = vector.load %arg7[%c0_16, %c0_17, %c0_18] : memref<1x16x4xf32, #tpu.memory_space<vmem>>, vector<1x16x4xf32>
      %35 = vector.shape_cast %34 : vector<1x16x4xf32> to vector<16x4xf32>
      %36 = vector.shape_cast %7 : vector<16x4xf32> to vector<1x16x4xf32>
      tpu.vector_store %arg7[%c0_16, %c0_17, %c0_18], %36 {strides = array<i32>} : memref<1x16x4xf32, #tpu.memory_space<vmem>>, vector<1x16x4xf32>,
    } else {
    }
    %true = arith.constant true
    %31 = arith.xori %28, %true : i1
    %32 = arith.extui %31 : i1 to i32
    %c0_i32_15 = arith.constant 0 : i32
    %33 = arith.cmpi ne, %32, %c0_i32_15 : i32
    scf.if %33 {
      %c0_16 = arith.constant 0 : index
      %c0_17 = arith.constant 0 : index
      %c0_18 = arith.constant 0 : index
      %34 = vector.load %arg7[%c0_16, %c0_17, %c0_18] : memref<1x16x4xf32, #tpu.memory_space<vmem>>, vector<1x16x4xf32>
      %35 = vector.shape_cast %34 : vector<1x16x4xf32> to vector<16x4xf32>
      %36 = arith.addf %35, %7 : vector<16x4xf32>
      %c0_19 = arith.constant 0 : index
      %c0_20 = arith.constant 0 : index
      %c0_21 = arith.constant 0 : index
      %37 = vector.load %arg7[%c0_19, %c0_20, %c0_21] : memref<1x16x4xf32, #tpu.memory_space<vmem>>, vector<1x16x4xf32>
      %38 = vector.shape_cast %37 : vector<1x16x4xf32> to vector<16x4xf32>
      %39 = vector.shape_cast %36 : vector<16x4xf32> to vector<1x16x4xf32>
      tpu.vector_store %arg7[%c0_19, %c0_20, %c0_21], %39 {strides = array<i32>} : memref<1x16x4xf32, #tpu.memory_space<vmem>>, vector<1x16x4xf32>,
    } else {
    }
    return
  }
  func.func @transform_0(%arg0: i32, %arg1: i32, %arg2: i32) -> (i32, i32, i32, i32) {
    %c0_i32 = arith.constant 0 : i32
    %c0_i32_0 = arith.constant 0 : i32
    return %arg0, %arg2, %arg1, %c0_i32 : i32, i32, i32, i32
  }
  func.func @transform_1(%arg0: i32, %arg1: i32, %arg2: i32) -> (i32, i32) {
    %c0_i32 = arith.constant 0 : i32
    %c0_i32_0 = arith.constant 0 : i32
    return %arg2, %c0_i32 : i32, i32
  }
  func.func @transform_2(%arg0: i32, %arg1: i32, %arg2: i32) -> (i32, i32, i32) {
    %c0_i32 = arith.constant 0 : i32
    %c0_i32_0 = arith.constant 0 : i32
    return %arg2, %arg1, %c0_i32 : i32, i32, i32
  }
  func.func @transform_3(%arg0: i32, %arg1: i32, %arg2: i32) -> (i32, i32, i32) {
    %c0_i32 = arith.constant 0 : i32
    %c0_i32_0 = arith.constant 0 : i32
    return %arg0, %arg1, %c0_i32 : i32, i32, i32
  }
  func.func @transform_4(%arg0: i32, %arg1: i32, %arg2: i32) -> (i32, i32, i32) {
    %c0_i32 = arith.constant 0 : i32
    %c0_i32_0 = arith.constant 0 : i32
    %c0_i32_1 = arith.constant 0 : i32
    return %arg0, %c0_i32, %c0_i32_0 : i32, i32, i32
  }
}

module attributes {stable_mosaic.version = 11 : i64} {
  func.func @_combine_kernel(%arg0: i32, %arg1: i32, %arg2: memref<1x4x256xf32, #tpu.memory_space<vmem>>, %arg3: memref<1x4x16xf32, #tpu.memory_space<vmem>>, %arg4: memref<1x4x16xf32, #tpu.memory_space<vmem>>, %arg5: memref<4x4xf32, #tpu.memory_space<vmem>>, %arg6: memref<1x4x256xf32, #tpu.memory_space<vmem>>) attributes {dimension_semantics = [#tpu.dimension_semantics<parallel>, #tpu.dimension_semantics<parallel>], iteration_bounds = array<i64: 2, 1>, scalar_prefetch = 0 : i64, scratch_operands = 0 : i64, tpu.core_type = #tpu.core_type<tc>, window_params = [{transform_indices = @transform_0, window_bounds = array<i64: 1, 4, 256>}, {transform_indices = @transform_1, window_bounds = array<i64: 1, 4, 16>}, {transform_indices = @transform_2, window_bounds = array<i64: 1, 4, 16>}, {transform_indices = @transform_3, window_bounds = array<i64: 4, 4>}, {transform_indices = @transform_4, window_bounds = array<i64: 1, 4, 256>}]} {
    %c0 = arith.constant 0 : index
    %c0_0 = arith.constant 0 : index
    %c0_1 = arith.constant 0 : index
    %0 = vector.load %arg2[%c0, %c0_0, %c0_1] : memref<1x4x256xf32, #tpu.memory_space<vmem>>, vector<1x4x256xf32>
    %1 = vector.shape_cast %0 : vector<1x4x256xf32> to vector<4x256xf32>
    %c0_2 = arith.constant 0 : index
    %c0_3 = arith.constant 0 : index
    %c0_4 = arith.constant 0 : index
    %2 = vector.load %arg3[%c0_2, %c0_3, %c0_4] : memref<1x4x16xf32, #tpu.memory_space<vmem>>, vector<1x4x16xf32>
    %3 = vector.shape_cast %2 : vector<1x4x16xf32> to vector<4x16xf32>
    %c0_5 = arith.constant 0 : index
    %c0_6 = arith.constant 0 : index
    %c0_7 = arith.constant 0 : index
    %4 = vector.load %arg4[%c0_5, %c0_6, %c0_7] : memref<1x4x16xf32, #tpu.memory_space<vmem>>, vector<1x4x16xf32>
    %5 = vector.shape_cast %4 : vector<1x4x16xf32> to vector<4x16xf32>
    %c0_8 = arith.constant 0 : index
    %c0_9 = arith.constant 0 : index
    %6 = vector.load %arg5[%c0_8, %c0_9] : memref<4x4xf32, #tpu.memory_space<vmem>>, vector<4x4xf32>
    %7 = vector.extract_strided_slice %6 {offsets = [0, 0], sizes = [4, 1], strides = [1, 1]} : vector<4x4xf32> to vector<4x1xf32>
    %8 = vector.broadcast %7 : vector<4x1xf32> to vector<4x16xf32>
    %9 = arith.mulf %3, %8 : vector<4x16xf32>
    %10 = vector.extract_strided_slice %6 {offsets = [0, 1], sizes = [4, 1], strides = [1, 1]} : vector<4x4xf32> to vector<4x1xf32>
    %11 = vector.broadcast %10 : vector<4x1xf32> to vector<4x16xf32>
    %12 = arith.addf %9, %11 : vector<4x16xf32>
    %cst = arith.constant 0.000000e+00 : f32
    %13 = vector.broadcast %cst : f32 to vector<4x16xf32>
    %14 = arith.maximumf %12, %13 : vector<4x16xf32>
    %15 = vector.extract_strided_slice %6 {offsets = [0, 2], sizes = [4, 1], strides = [1, 1]} : vector<4x4xf32> to vector<4x1xf32>
    %16 = vector.broadcast %15 : vector<4x1xf32> to vector<4x16xf32>
    %17 = arith.mulf %5, %16 : vector<4x16xf32>
    %18 = vector.extract_strided_slice %6 {offsets = [0, 3], sizes = [4, 1], strides = [1, 1]} : vector<4x4xf32> to vector<4x1xf32>
    %19 = vector.broadcast %18 : vector<4x1xf32> to vector<4x16xf32>
    %20 = arith.addf %17, %19 : vector<4x16xf32>
    %cst_10 = arith.constant 0.000000e+00 : f32
    %21 = vector.broadcast %cst_10 : f32 to vector<4x16xf32>
    %22 = arith.maximumf %20, %21 : vector<4x16xf32>
    %cst_11 = arith.constant 0.000000e+00 : f32
    %23 = vector.broadcast %cst_11 : f32 to vector<4x16xf32>
    %24 = arith.subf %23, %14 : vector<4x16xf32>
    %25 = math.exp %24 : vector<4x16xf32>
    %cst_12 = arith.constant 1.000000e+00 : f32
    %26 = vector.broadcast %cst_12 : f32 to vector<4x16xf32>
    %27 = arith.addf %26, %25 : vector<4x16xf32>
    %28 = tpu.reciprocal %27 {approx = true} : vector<4x16xf32> -> vector<4x16xf32>
    %cst_13 = arith.constant 1.000000e+00 : f32
    %29 = vector.broadcast %cst_13 : f32 to vector<4x16xf32>
    %30 = arith.addf %28, %29 : vector<4x16xf32>
    %cst_14 = arith.constant 0.000000e+00 : f32
    %31 = vector.broadcast %cst_14 : f32 to vector<4x16xf32>
    %32 = arith.subf %31, %22 : vector<4x16xf32>
    %33 = math.exp %32 : vector<4x16xf32>
    %cst_15 = arith.constant 1.000000e+00 : f32
    %34 = vector.broadcast %cst_15 : f32 to vector<4x16xf32>
    %35 = arith.addf %34, %33 : vector<4x16xf32>
    %36 = tpu.reciprocal %35 {approx = true} : vector<4x16xf32> -> vector<4x16xf32>
    %37 = vector.extract_strided_slice %30 {offsets = [0, 0], sizes = [4, 1], strides = [1, 1]} : vector<4x16xf32> to vector<4x1xf32>
    %38 = vector.broadcast %37 : vector<4x1xf32> to vector<4x16xf32>
    %39 = arith.addf %38, %36 : vector<4x16xf32>
    %40 = vector.extract_strided_slice %30 {offsets = [0, 1], sizes = [4, 1], strides = [1, 1]} : vector<4x16xf32> to vector<4x1xf32>
    %41 = vector.broadcast %40 : vector<4x1xf32> to vector<4x16xf32>
    %42 = arith.addf %41, %36 : vector<4x16xf32>
    %43 = vector.extract_strided_slice %30 {offsets = [0, 2], sizes = [4, 1], strides = [1, 1]} : vector<4x16xf32> to vector<4x1xf32>
    %44 = vector.broadcast %43 : vector<4x1xf32> to vector<4x16xf32>
    %45 = arith.addf %44, %36 : vector<4x16xf32>
    %46 = vector.extract_strided_slice %30 {offsets = [0, 3], sizes = [4, 1], strides = [1, 1]} : vector<4x16xf32> to vector<4x1xf32>
    %47 = vector.broadcast %46 : vector<4x1xf32> to vector<4x16xf32>
    %48 = arith.addf %47, %36 : vector<4x16xf32>
    %49 = vector.extract_strided_slice %30 {offsets = [0, 4], sizes = [4, 1], strides = [1, 1]} : vector<4x16xf32> to vector<4x1xf32>
    %50 = vector.broadcast %49 : vector<4x1xf32> to vector<4x16xf32>
    %51 = arith.addf %50, %36 : vector<4x16xf32>
    %52 = vector.extract_strided_slice %30 {offsets = [0, 5], sizes = [4, 1], strides = [1, 1]} : vector<4x16xf32> to vector<4x1xf32>
    %53 = vector.broadcast %52 : vector<4x1xf32> to vector<4x16xf32>
    %54 = arith.addf %53, %36 : vector<4x16xf32>
    %55 = vector.extract_strided_slice %30 {offsets = [0, 6], sizes = [4, 1], strides = [1, 1]} : vector<4x16xf32> to vector<4x1xf32>
    %56 = vector.broadcast %55 : vector<4x1xf32> to vector<4x16xf32>
    %57 = arith.addf %56, %36 : vector<4x16xf32>
    %58 = vector.extract_strided_slice %30 {offsets = [0, 7], sizes = [4, 1], strides = [1, 1]} : vector<4x16xf32> to vector<4x1xf32>
    %59 = vector.broadcast %58 : vector<4x1xf32> to vector<4x16xf32>
    %60 = arith.addf %59, %36 : vector<4x16xf32>
    %61 = vector.extract_strided_slice %30 {offsets = [0, 8], sizes = [4, 1], strides = [1, 1]} : vector<4x16xf32> to vector<4x1xf32>
    %62 = vector.broadcast %61 : vector<4x1xf32> to vector<4x16xf32>
    %63 = arith.addf %62, %36 : vector<4x16xf32>
    %64 = vector.extract_strided_slice %30 {offsets = [0, 9], sizes = [4, 1], strides = [1, 1]} : vector<4x16xf32> to vector<4x1xf32>
    %65 = vector.broadcast %64 : vector<4x1xf32> to vector<4x16xf32>
    %66 = arith.addf %65, %36 : vector<4x16xf32>
    %67 = vector.extract_strided_slice %30 {offsets = [0, 10], sizes = [4, 1], strides = [1, 1]} : vector<4x16xf32> to vector<4x1xf32>
    %68 = vector.broadcast %67 : vector<4x1xf32> to vector<4x16xf32>
    %69 = arith.addf %68, %36 : vector<4x16xf32>
    %70 = vector.extract_strided_slice %30 {offsets = [0, 11], sizes = [4, 1], strides = [1, 1]} : vector<4x16xf32> to vector<4x1xf32>
    %71 = vector.broadcast %70 : vector<4x1xf32> to vector<4x16xf32>
    %72 = arith.addf %71, %36 : vector<4x16xf32>
    %73 = vector.extract_strided_slice %30 {offsets = [0, 12], sizes = [4, 1], strides = [1, 1]} : vector<4x16xf32> to vector<4x1xf32>
    %74 = vector.broadcast %73 : vector<4x1xf32> to vector<4x16xf32>
    %75 = arith.addf %74, %36 : vector<4x16xf32>
    %76 = vector.extract_strided_slice %30 {offsets = [0, 13], sizes = [4, 1], strides = [1, 1]} : vector<4x16xf32> to vector<4x1xf32>
    %77 = vector.broadcast %76 : vector<4x1xf32> to vector<4x16xf32>
    %78 = arith.addf %77, %36 : vector<4x16xf32>
    %79 = vector.extract_strided_slice %30 {offsets = [0, 14], sizes = [4, 1], strides = [1, 1]} : vector<4x16xf32> to vector<4x1xf32>
    %80 = vector.broadcast %79 : vector<4x1xf32> to vector<4x16xf32>
    %81 = arith.addf %80, %36 : vector<4x16xf32>
    %82 = vector.extract_strided_slice %30 {offsets = [0, 15], sizes = [4, 1], strides = [1, 1]} : vector<4x16xf32> to vector<4x1xf32>
    %83 = vector.broadcast %82 : vector<4x1xf32> to vector<4x16xf32>
    %84 = arith.addf %83, %36 : vector<4x16xf32>
    %85 = tpu.concatenate %39, %42, %45, %48, %51, %54, %57, %60, %63, %66, %69, %72, %75, %78, %81, %84 in 1 : vector<4x16xf32>, vector<4x16xf32>, vector<4x16xf32>, vector<4x16xf32>, vector<4x16xf32>, vector<4x16xf32>, vector<4x16xf32>, vector<4x16xf32>, vector<4x16xf32>, vector<4x16xf32>, vector<4x16xf32>, vector<4x16xf32>, vector<4x16xf32>, vector<4x16xf32>, vector<4x16xf32>, vector<4x16xf32> -> vector<4x256xf32>
    %86 = arith.mulf %1, %85 : vector<4x256xf32>
    %c0_16 = arith.constant 0 : index
    %c0_17 = arith.constant 0 : index
    %c0_18 = arith.constant 0 : index
    %87 = vector.load %arg6[%c0_16, %c0_17, %c0_18] : memref<1x4x256xf32, #tpu.memory_space<vmem>>, vector<1x4x256xf32>
    %88 = vector.shape_cast %87 : vector<1x4x256xf32> to vector<4x256xf32>
    %89 = vector.shape_cast %86 : vector<4x256xf32> to vector<1x4x256xf32>
    tpu.vector_store %arg6[%c0_16, %c0_17, %c0_18], %89 {strides = array<i32>} : memref<1x4x256xf32, #tpu.memory_space<vmem>>, vector<1x4x256xf32>,
    return
  }
  func.func @transform_0(%arg0: i32, %arg1: i32) -> (i32, i32, i32) {
    %c0_i32 = arith.constant 0 : i32
    %c0_i32_0 = arith.constant 0 : i32
    return %arg0, %arg1, %c0_i32 : i32, i32, i32
  }
  func.func @transform_1(%arg0: i32, %arg1: i32) -> (i32, i32, i32) {
    %c0_i32 = arith.constant 0 : i32
    %c0_i32_0 = arith.constant 0 : i32
    return %arg0, %arg1, %c0_i32 : i32, i32, i32
  }
  func.func @transform_2(%arg0: i32, %arg1: i32) -> (i32, i32, i32) {
    %c0_i32 = arith.constant 0 : i32
    %c0_i32_0 = arith.constant 0 : i32
    return %arg0, %arg1, %c0_i32 : i32, i32, i32
  }
  func.func @transform_3(%arg0: i32, %arg1: i32) -> (i32, i32) {
    %c0_i32 = arith.constant 0 : i32
    %c0_i32_0 = arith.constant 0 : i32
    return %arg1, %c0_i32 : i32, i32
  }
  func.func @transform_4(%arg0: i32, %arg1: i32) -> (i32, i32, i32) {
    %c0_i32 = arith.constant 0 : i32
    %c0_i32_0 = arith.constant 0 : i32
    return %arg0, %arg1, %c0_i32 : i32, i32, i32
  }
}

</mosaic_0001>

<llo_original>
// kernel: oip_forward.3
$region0: #{oip_forward.3}
  #allocation0 [shape = 'u32[]', space=smem, size = 0x4, offset = 0x4, fixed_abs, tag = 'smem constant byte address 0x4 - core index']
  #allocation1 [shape = 'u32[144,128]{1,0:T(1,128)}', space=vmem, size = 0x12000, scoped, tag = 'internal scratch']
  %s0 = inlined_call_operand.vmem [shape: f32[2,4,256], index: 0, kind: input, shape index: {}]
  %s1 = inlined_call_operand.vmem [shape: f32[2,4,16], index: 1, kind: input, shape index: {}]
  %s2 = inlined_call_operand.vmem [shape: f32[2,4,16], index: 2, kind: input, shape index: {}]
  %s3 = inlined_call_operand.vmem [shape: f32[4,4], index: 3, kind: input, shape index: {}]
  %s4 = inlined_call_operand.vmem [shape: f32[2,4,256], index: 4, kind: output, shape index: {}]
  %s5 = sld [smem:[#allocation0]]
  $region49: #{oip_forward.3} parent=0
    _
  %s7 = ssub.s32 1, %s5
  %s8 = scalar_select 0, %s7, %s5
  loop: start=0, step=1, limit=4
  $region2: #{oip_forward.3} parent=0 // loop_pre_header
    _
  $region3: #{oip_forward.3} parent=0 // loop_header
    %s10 = sphi 0, %s14
    %p11 = scmp.ge.s32.totalorder %s10, 4
    %s17 = sphi 0, %s29
    %s18 = sphi 0, %s25
    %s19 = sphi 0, %s17
    %s20 = sphi 0, %s18
    %s21 = sphi 0, %s19
    %s22 = sphi 0, %s20
    %s34 = sphi 0, %s36
    %s37 = sphi 0, %s34
    %s38 = sphi 0, %s37
    %s54 = sphi 0, %s38
    %s62 = sphi 0, %s64
    %s65 = sphi 0, %s62
    %s66 = sphi 0, %s65
    %s82 = sphi 0, %s66
    %s90 = sphi 0, %s92
    %s93 = sphi 0, %s90
    %s94 = sphi 0, %s93
    %s110 = sphi 0, %s94
    %s116 = sphi 0, %s118
    %s119 = sphi 0, %s116
    %s120 = sphi 0, %s119
    %s136 = sphi 0, %s120
    %s144 = sphi 0, %s146
    %s147 = sphi 0, %s144
    %s148 = sphi 0, %s147
    %s164 = sphi 0, %s148
  $region4: #{oip_forward.3} parent=0 // loop_header_branch
    %13 = sbr.rel (%p11) target = $region8
  $region5: #{oip_forward.3} parent=0 // loop_body
    %s15 = ssub.s32 %s10, 1
    %s16 = ssub.s32 %s10, 2
    %s23 = sadd.s32 1, %s18
    %p24 = scmp.ge.s32.totalorder %s23, 1
    %s25 = scalar_select %p24, 0, %s23
    %s26 = sadd.s32 1, %s17
    %s27 = scalar_select %p24, %s26, %s17
    %p28 = scmp.ge.s32.totalorder %s27, 2
    %s29 = scalar_select %p28, 0, %s27
    %s30 = ssub.s32 %s17, %s29
    %s31 = ssub.s32 %s18, %s25
    %s32 = sor.u32 %s30, %s31
    %p33 = scmp.eq.s32.totalorder %s32, 0
    %s35 = sadd.s32 %s34, 1
    %s36 = scalar_select %p33, %s34, %s35
    %p39 = pneg %p33
    %p40 = scmp.eq.s32.totalorder %s10, 1
    %p41 = por %p39, %p40
    %p42 = scmp.ne.s32.totalorder %s34, %s37
    %p43 = scmp.eq.s32.totalorder %s10, 0
    %p44 = por %p42, %p43
    %p45 = scmp.ne.s32.totalorder %s34, %s37
    %p46 = scmp.eq.s32.totalorder %s15, 1
    %p47 = por %p45, %p46
    %p48 = scmp.ne.s32.totalorder %s37, %s38
    %p49 = scmp.eq.s32.totalorder %s15, 0
    %p50 = por %p48, %p49
    %p51 = scmp.ne.s32.totalorder %s37, %s38
    %p52 = scmp.eq.s32.totalorder %s16, 1
    %p53 = por %p51, %p52
    %p55 = scmp.ne.s32.totalorder %s38, %s54
    %p56 = scmp.eq.s32.totalorder %s16, 0
    %p57 = por %p55, %p56
    %s58 = ssub.s32 %s17, %s29
    %s59 = ssub.s32 %s18, %s25
    %s60 = sor.u32 %s58, %s59
    %p61 = scmp.eq.s32.totalorder %s60, 0
    %s63 = sadd.s32 %s62, 1
    %s64 = scalar_select %p61, %s62, %s63
    %p67 = pneg %p61
    %p68 = scmp.eq.s32.totalorder %s10, 1
    %p69 = por %p67, %p68
    %p70 = scmp.ne.s32.totalorder %s62, %s65
    %p71 = scmp.eq.s32.totalorder %s10, 0
    %p72 = por %p70, %p71
    %p73 = scmp.ne.s32.totalorder %s62, %s65
    %p74 = scmp.eq.s32.totalorder %s15, 1
    %p75 = por %p73, %p74
    %p76 = scmp.ne.s32.totalorder %s65, %s66
    %p77 = scmp.eq.s32.totalorder %s15, 0
    %p78 = por %p76, %p77
    %p79 = scmp.ne.s32.totalorder %s65, %s66
    %p80 = scmp.eq.s32.totalorder %s16, 1
    %p81 = por %p79, %p80
    %p83 = scmp.ne.s32.totalorder %s66, %s82
    %p84 = scmp.eq.s32.totalorder %s16, 0
    %p85 = por %p83, %p84
    %s86 = ssub.s32 %s17, %s29
    %s87 = ssub.s32 %s18, %s25
    %s88 = sor.u32 %s86, %s87
    %p89 = scmp.eq.s32.totalorder %s88, 0
    %s91 = sadd.s32 %s90, 1
    %s92 = scalar_select %p89, %s90, %s91
    %p95 = pneg %p89
    %p96 = scmp.eq.s32.totalorder %s10, 1
    %p97 = por %p95, %p96
    %p98 = scmp.ne.s32.totalorder %s90, %s93
    %p99 = scmp.eq.s32.totalorder %s10, 0
    %p100 = por %p98, %p99
    %p101 = scmp.ne.s32.totalorder %s90, %s93
    %p102 = scmp.eq.s32.totalorder %s15, 1
    %p103 = por %p101, %p102
    %p104 = scmp.ne.s32.totalorder %s93, %s94
    %p105 = scmp.eq.s32.totalorder %s15, 0
    %p106 = por %p104, %p105
    %p107 = scmp.ne.s32.totalorder %s93, %s94
    %p108 = scmp.eq.s32.totalorder %s16, 1
    %p109 = por %p107, %p108
    %p111 = scmp.ne.s32.totalorder %s94, %s110
    %p112 = scmp.eq.s32.totalorder %s16, 0
    %p113 = por %p111, %p112
    %s114 = ssub.s32 %s18, %s25
    %p115 = scmp.eq.s32.totalorder %s114, 0
    %s117 = sadd.s32 %s116, 1
    %s118 = scalar_select %p115, %s116, %s117
    %p121 = pneg %p115
    %p122 = scmp.eq.s32.totalorder %s10, 1
    %p123 = por %p121, %p122
    %p124 = scmp.ne.s32.totalorder %s116, %s119
    %p125 = scmp.eq.s32.totalorder %s10, 0
    %p126 = por %p124, %p125
    %p127 = scmp.ne.s32.totalorder %s116, %s119
    %p128 = scmp.eq.s32.totalorder %s15, 1
    %p129 = por %p127, %p128
    %p130 = scmp.ne.s32.totalorder %s119, %s120
    %p131 = scmp.eq.s32.totalorder %s15, 0
    %p132 = por %p130, %p131
    %p133 = scmp.ne.s32.totalorder %s119, %s120
    %p134 = scmp.eq.s32.totalorder %s16, 1
    %p135 = por %p133, %p134
    %p137 = scmp.ne.s32.totalorder %s120, %s136
    %p138 = scmp.eq.s32.totalorder %s16, 0
    %p139 = por %p137, %p138
    %s140 = ssub.s32 %s17, %s29
    %s141 = ssub.s32 %s18, %s25
    %s142 = sor.u32 %s140, %s141
    %p143 = scmp.eq.s32.totalorder %s142, 0
    %s145 = sadd.s32 %s144, 1
    %s146 = scalar_select %p143, %s144, %s145
    %p149 = pneg %p143
    %p150 = scmp.eq.s32.totalorder %s10, 1
    %p151 = por %p149, %p150
    %p152 = scmp.ne.s32.totalorder %s144, %s147
    %p153 = scmp.eq.s32.totalorder %s10, 0
    %p154 = por %p152, %p153
    %p155 = scmp.ne.s32.totalorder %s144, %s147
    %p156 = scmp.eq.s32.totalorder %s15, 1
    %p157 = por %p155, %p156
    %p158 = scmp.ne.s32.totalorder %s147, %s148
    %p159 = scmp.eq.s32.totalorder %s15, 0
    %p160 = por %p158, %p159
    %p161 = scmp.ne.s32.totalorder %s147, %s148
    %p162 = scmp.eq.s32.totalorder %s16, 1
    %p163 = por %p161, %p162
    %p165 = scmp.ne.s32.totalorder %s148, %s164
    %p166 = scmp.eq.s32.totalorder %s16, 0
    %p167 = por %p165, %p166
    %p168 = scmp.le.s32.totalorder 1, %s10
    %p169 = scmp.lt.s32.totalorder %s10, 3
    %p170 = pnand %p168, %p169
    %p171 = pneg %p170
    // Predicated region
    $region9: #{oip_forward.3} parent=5 // pred_check
      _
    $region10: #{oip_forward.3} parent=5 // pred_check_branch
      %173 = sbr.rel (%p170) target = $region12
    $region11: #{oip_forward.3} parent=5 // pred_region
      %s174 = ssub.s32 %s10, 1
      // Predicated region
      $region13: #{oip_forward.3} parent=11 // pred_check
        %p175 = pneg %p132
      $region14: #{oip_forward.3} parent=11 // pred_check_branch
        %177 = sbr.rel (%p175) target = $region16
      $region15: #{oip_forward.3} parent=11 // pred_region
        %p178 = scmp.lt.s32.totalorder %s20, 0
        %s179 = scalar_select %p178, %s20, 0
        %s180 = smul.addr %s179, 4
        %s181 = scalar_lea.vmem %s3, %s180
      $region16: #{oip_forward.3} parent=11 // pred_fallthru
        _
    $region12: #{oip_forward.3} parent=5 // pred_fallthru
      _
    %p182 = scmp.lt.s32.totalorder %s10, 2
    // Predicated region
    $region17: #{oip_forward.3} parent=5 // pred_check
      %p183 = pneg %p182
    $region18: #{oip_forward.3} parent=5 // pred_check_branch
      %185 = sbr.rel (%p183) target = $region20
    $region19: #{oip_forward.3} parent=5 // pred_region
      // Predicated region
      $region21: #{oip_forward.3} parent=19 // pred_check
        %p186 = pneg %p44
      $region22: #{oip_forward.3} parent=19 // pred_check_branch
        %188 = sbr.rel (%p186) target = $region24
      $region23: #{oip_forward.3} parent=19 // pred_region
        %p189 = scmp.lt.s32.totalorder %s17, 1
        %s190 = scalar_select %p189, %s17, 1
        %p191 = scmp.lt.s32.totalorder %s18, 0
        %s192 = scalar_select %p191, %s18, 0
        %s193 = smul.addr %s192, 2
        %s194 = smul.addr %s190, 2
        %s195 = sadd.s32 %s193, %s194
        %s196 = smul.addr %s195, 4
        %s197 = scalar_lea.vmem %s0, %s196
      $region24: #{oip_forward.3} parent=19 // pred_fallthru
        _
      // Predicated region
      $region25: #{oip_forward.3} parent=19 // pred_check
        %p198 = pneg %p72
      $region26: #{oip_forward.3} parent=19 // pred_check_branch
        %200 = sbr.rel (%p198) target = $region28
      $region27: #{oip_forward.3} parent=19 // pred_region
        %p201 = scmp.lt.s32.totalorder %s17, 1
        %s202 = scalar_select %p201, %s17, 1
        %p203 = scmp.lt.s32.totalorder %s18, 0
        %s204 = scalar_select %p203, %s18, 0
        %s205 = sadd.s32 %s204, %s202
        %s206 = smul.addr %s205, 4
        %s207 = scalar_lea.vmem %s1, %s206
      $region28: #{oip_forward.3} parent=19 // pred_fallthru
        _
      // Predicated region
      $region29: #{oip_forward.3} parent=19 // pred_check
        %p208 = pneg %p100
      $region30: #{oip_forward.3} parent=19 // pred_check_branch
        %210 = sbr.rel (%p208) target = $region32
      $region31: #{oip_forward.3} parent=19 // pred_region
        %p211 = scmp.lt.s32.totalorder %s17, 1
        %s212 = scalar_select %p211, %s17, 1
        %p213 = scmp.lt.s32.totalorder %s18, 0
        %s214 = scalar_select %p213, %s18, 0
        %s215 = sadd.s32 %s214, %s212
        %s216 = smul.addr %s215, 4
        %s217 = scalar_lea.vmem %s2, %s216
      $region32: #{oip_forward.3} parent=19 // pred_fallthru
        _
    $region20: #{oip_forward.3} parent=5 // pred_fallthru
      _
    %p218 = scmp.le.s32.totalorder 1, %s10
    %p219 = scmp.lt.s32.totalorder %s10, 3
    %p220 = pnand %p218, %p219
    %p221 = pneg %p220
    // Predicated region
    $region33: #{oip_forward.3} parent=5 // pred_check
      _
    $region34: #{oip_forward.3} parent=5 // pred_check_branch
      %223 = sbr.rel (%p220) target = $region36
    $region35: #{oip_forward.3} parent=5 // pred_region
      %s224 = ssub.s32 %s10, 1
      %p225 = scmp.lt.s32.totalorder %s19, 1
      %s226 = scalar_select %p225, %s19, 1
      %p227 = scmp.lt.s32.totalorder %s20, 0
      %s228 = scalar_select %p227, %s20, 0
      %s229 = smul.addr %s228, 2
      %s230 = smul.addr %s226, 2
      %s231 = sadd.s32 %s229, %s230
      %s232 = smul.addr %s231, 4
      %s233 = scalar_lea.vmem %s0, %s232
      %p234 = pneg %p50
      %p235 = pneg %p47
      %p236 = scmp.lt.s32.totalorder %s19, 1
      %s237 = scalar_select %p236, %s19, 1
      %p238 = scmp.lt.s32.totalorder %s20, 0
      %s239 = scalar_select %p238, %s20, 0
      %s240 = sadd.s32 %s239, %s237
      %s241 = smul.addr %s240, 4
      %s242 = scalar_lea.vmem %s1, %s241
      %p243 = pneg %p78
      %p244 = pneg %p75
      %p245 = scmp.lt.s32.totalorder %s19, 1
      %s246 = scalar_select %p245, %s19, 1
      %p247 = scmp.lt.s32.totalorder %s20, 0
      %s248 = scalar_select %p247, %s20, 0
      %s249 = sadd.s32 %s248, %s246
      %s250 = smul.addr %s249, 4
      %s251 = scalar_lea.vmem %s2, %s250
      %p252 = pneg %p106
      %p253 = pneg %p103
      %p254 = scmp.lt.s32.totalorder %s20, 0
      %s255 = scalar_select %p254, %s20, 0
      %s256 = smul.addr %s255, 4
      %s257 = scalar_lea.vmem %s3, %s256
      %p258 = pneg %p132
      %p259 = pneg %p129
      %p260 = pneg %p160
      %p261 = pneg %p157
      %p262 = scmp.lt.s32.totalorder %s19, 1
      %s263 = scalar_select %p262, %s19, 1
      %p264 = scmp.lt.s32.totalorder %s20, 0
      %s265 = scalar_select %p264, %s20, 0
      %s266 = smul.addr %s265, 2
      %s267 = smul.addr %s263, 2
      %s268 = sadd.s32 %s266, %s267
      %s269 = smul.addr %s268, 4
      %s270 = scalar_lea.vmem %s4, %s269
      %p271 = scmp.lt.s32.totalorder %s19, 1
      %s272 = scalar_select %p271, %s19, 1
      %p273 = scmp.lt.s32.totalorder %s20, 0
      %s274 = scalar_select %p273, %s20, 0
      %s275 = smul.addr %s274, 2
      %s276 = smul.addr %s272, 2
      %s277 = sadd.s32 %s275, %s276
      %s278 = smul.addr %s277, 4
      %s279 = scalar_lea.vmem %s0, %s278
      %p280 = scmp.lt.s32.totalorder %s19, 1
      %s281 = scalar_select %p280, %s19, 1
      %p282 = scmp.lt.s32.totalorder %s20, 0
      %s283 = scalar_select %p282, %s20, 0
      %s284 = sadd.s32 %s283, %s281
      %s285 = smul.addr %s284, 4
      %s286 = scalar_lea.vmem %s1, %s285
      %p287 = scmp.lt.s32.totalorder %s19, 1
      %s288 = scalar_select %p287, %s19, 1
      %p289 = scmp.lt.s32.totalorder %s20, 0
      %s290 = scalar_select %p289, %s20, 0
      %s291 = sadd.s32 %s290, %s288
      %s292 = smul.addr %s291, 4
      %s293 = scalar_lea.vmem %s2, %s292
      %p294 = scmp.lt.s32.totalorder %s20, 0
      %s295 = scalar_select %p294, %s20, 0
      %s296 = smul.addr %s295, 4
      %s297 = scalar_lea.vmem %s3, %s296
      %p298 = scmp.lt.s32.totalorder %s19, 1
      %s299 = scalar_select %p298, %s19, 1
      %p300 = scmp.lt.s32.totalorder %s20, 0
      %s301 = scalar_select %p300, %s20, 0
      %s302 = smul.addr %s301, 2
      %s303 = smul.addr %s299, 2
      %s304 = sadd.s32 %s302, %s303
      %s305 = smul.addr %s304, 4
      %s306 = scalar_lea.vmem %s4, %s305
      %v307 = vld [vmem:[%s279] sm:$0xff]
      %v308 = vld [vmem:[%s286] sm:$0xf]
      %v309 = vld [vmem:[%s293] sm:$0xf]
      %v310 = vld [vmem:[%s297] sm:$0xf]
      %312 = vset.pattern.permute.xlu0 0
      %313 = vperm.xlu0 %312, %v310
      %v314 = vpop.permute.xlu0 %313
      %v316 = vmul.f32 %v308, %v314
      %317 = vset.pattern.permute.xlu0 1
      %318 = vperm.xlu0 %317, %v310
      %v319 = vpop.permute.xlu0 %318
      %v321 = vadd.f32 %v316, %v319
      %v322 = vmax.f32 %v321, 0.0
      %323 = vset.pattern.permute.xlu0 2
      %324 = vperm.xlu0 %323, %v310
      %v325 = vpop.permute.xlu0 %324
      %v327 = vmul.f32 %v309, %v325
      %328 = vset.pattern.permute.xlu0 3
      %329 = vperm.xlu0 %328, %v310
      %v330 = vpop.permute.xlu0 %329
      %v332 = vadd.f32 %v327, %v330
      %v333 = vmax.f32 %v332, 0.0
      %v334 = vsub.f32 0.0, %v322
      %v335 = vmul.f32 %v334, 1.442695
      %v336 = vpow.pop %v335
      %v337 = vadd.f32 %v336, 1.0
      %v338 = vrcp.pop %v337
      %v339 = vadd.f32 %v338, 1.0
      %v340 = vsub.f32 0.0, %v333
      %v341 = vmul.f32 %v340, 1.442695
      %v342 = vpow.pop %v341
      %v343 = vadd.f32 %v342, 1.0
      %v344 = vrcp.pop %v343
      %346 = vset.pattern.permute.xlu0 0
      %347 = vperm.xlu0 %346, %v339
      %v348 = vpop.permute.xlu0 %347
      %v350 = vadd.f32 %v348, %v344
      %351 = vset.pattern.permute.xlu0 1
      %352 = vperm.xlu0 %351, %v339
      %v353 = vpop.permute.xlu0 %352
      %v355 = vadd.f32 %v353, %v344
      %356 = vset.pattern.permute.xlu0 2
      %357 = vperm.xlu0 %356, %v339
      %v358 = vpop.permute.xlu0 %357
      %v360 = vadd.f32 %v358, %v344
      %361 = vset.pattern.permute.xlu0 3
      %362 = vperm.xlu0 %361, %v339
      %v363 = vpop.permute.xlu0 %362
      %v365 = vadd.f32 %v363, %v344
      %366 = vset.pattern.permute.xlu0 4
      %367 = vperm.xlu0 %366, %v339
      %v368 = vpop.permute.xlu0 %367
      %v370 = vadd.f32 %v368, %v344
      %371 = vset.pattern.permute.xlu0 5
      %372 = vperm.xlu0 %371, %v339
      %v373 = vpop.permute.xlu0 %372
      %v375 = vadd.f32 %v373, %v344
      %376 = vset.pattern.permute.xlu0 6
      %377 = vperm.xlu0 %376, %v339
      %v378 = vpop.permute.xlu0 %377
      %v380 = vadd.f32 %v378, %v344
      %381 = vset.pattern.permute.xlu0 7
      %382 = vperm.xlu0 %381, %v339
      %v383 = vpop.permute.xlu0 %382
      %v385 = vadd.f32 %v383, %v344
      %386 = vset.pattern.permute.xlu0 8
      %387 = vperm.xlu0 %386, %v339
      %v388 = vpop.permute.xlu0 %387
      %v390 = vadd.f32 %v388, %v344
      %391 = vset.pattern.permute.xlu0 9
      %392 = vperm.xlu0 %391, %v339
      %v393 = vpop.permute.xlu0 %392
      %v395 = vadd.f32 %v393, %v344
      %396 = vset.pattern.permute.xlu0 10
      %397 = vperm.xlu0 %396, %v339
      %v398 = vpop.permute.xlu0 %397
      %v400 = vadd.f32 %v398, %v344
      %401 = vset.pattern.permute.xlu0 11
      %402 = vperm.xlu0 %401, %v339
      %v403 = vpop.permute.xlu0 %402
      %v405 = vadd.f32 %v403, %v344
      %406 = vset.pattern.permute.xlu0 12
      %407 = vperm.xlu0 %406, %v339
      %v408 = vpop.permute.xlu0 %407
      %v410 = vadd.f32 %v408, %v344
      %411 = vset.pattern.permute.xlu0 13
      %412 = vperm.xlu0 %411, %v339
      %v413 = vpop.permute.xlu0 %412
      %v415 = vadd.f32 %v413, %v344
      %416 = vset.pattern.permute.xlu0 14
      %417 = vperm.xlu0 %416, %v339
      %v418 = vpop.permute.xlu0 %417
      %v420 = vadd.f32 %v418, %v344
      %421 = vset.pattern.permute.xlu0 15
      %422 = vperm.xlu0 %421, %v339
      %v423 = vpop.permute.xlu0 %422
      %v425 = vadd.f32 %v423, %v344
      %427 = vrot.lane.b32.xlu0 %v355, 16
      %v428 = vpop.permute.xlu0 %427
      %431 = vrot.lane.b32.xlu0 %v360, 32
      %v432 = vpop.permute.xlu0 %431
      %435 = vrot.lane.b32.xlu0 %v365, 48
      %v436 = vpop.permute.xlu0 %435
      %439 = vrot.lane.b32.xlu0 %v370, 64
      %v440 = vpop.permute.xlu0 %439
      %443 = vrot.lane.b32.xlu0 %v375, 80
      %v444 = vpop.permute.xlu0 %443
      %447 = vrot.lane.b32.xlu0 %v380, 96
      %v448 = vpop.permute.xlu0 %447
      %451 = vrot.lane.b32.xlu0 %v385, 112
      %v452 = vpop.permute.xlu0 %451
      %455 = vrot.lane.b32.xlu0 %v395, 16
      %v456 = vpop.permute.xlu0 %455
      %459 = vrot.lane.b32.xlu0 %v400, 32
      %v460 = vpop.permute.xlu0 %459
      %463 = vrot.lane.b32.xlu0 %v405, 48
      %v464 = vpop.permute.xlu0 %463
      %467 = vrot.lane.b32.xlu0 %v410, 64
      %v468 = vpop.permute.xlu0 %467
      %471 = vrot.lane.b32.xlu0 %v415, 80
      %v472 = vpop.permute.xlu0 %471
      %475 = vrot.lane.b32.xlu0 %v420, 96
      %v476 = vpop.permute.xlu0 %475
      %479 = vrot.lane.b32.xlu0 %v425, 112
      %v480 = vpop.permute.xlu0 %479
      %vm482 = vcmask 130048
      %v483 = vsel %vm482, %v350, %v428
      %vm484 = vcmask 261120
      %v485 = vsel %vm484, %v483, %v432
      %vm486 = vcmask 392192
      %v487 = vsel %vm486, %v485, %v436
      %vm488 = vcmask 523264
      %v489 = vsel %vm488, %v487, %v440
      %vm490 = vcmask 654336
      %v491 = vsel %vm490, %v489, %v444
      %vm492 = vcmask 785408
      %v493 = vsel %vm492, %v491, %v448
      %vm494 = vcmask 916480
      %v495 = vsel %vm494, %v493, %v452
      %v496 = vsel %vm482, %v390, %v456
      %v497 = vsel %vm484, %v496, %v460
      %v498 = vsel %vm486, %v497, %v464
      %v499 = vsel %vm488, %v498, %v468
      %v500 = vsel %vm490, %v499, %v472
      %v501 = vsel %vm492, %v500, %v476
      %v502 = vsel %vm494, %v501, %v480
      %v505 = vcombine.low %v495, %v502
      %v507 = vmul.f32 %v307, %v505
      %508 = vst [vmem:[%s306] sm:$0xff] %v507
      %p509 = scmp.lt.s32.totalorder %s19, 1
      %s510 = scalar_select %p509, %s19, 1
      %p511 = scmp.lt.s32.totalorder %s20, 0
      %s512 = scalar_select %p511, %s20, 0
      %s513 = smul.addr %s512, 2
      %s514 = smul.addr %s510, 2
      %s515 = sadd.s32 %s513, %s514
      %s516 = smul.addr %s515, 4
      %s517 = scalar_lea.vmem %s4, %s516
      // Predicated region
      $region37: #{oip_forward.3} parent=35 // pred_check
        %p518 = pneg %p157
      $region38: #{oip_forward.3} parent=35 // pred_check_branch
        %520 = sbr.rel (%p518) target = $region40
      $region39: #{oip_forward.3} parent=35 // pred_region
        _
      $region40: #{oip_forward.3} parent=35 // pred_fallthru
        _
    $region36: #{oip_forward.3} parent=5 // pred_fallthru
      _
    %p521 = scmp.le.s32.totalorder 2, %s10
    // Predicated region
    $region41: #{oip_forward.3} parent=5 // pred_check
      %p522 = pneg %p521
    $region42: #{oip_forward.3} parent=5 // pred_check_branch
      %524 = sbr.rel (%p522) target = $region44
    $region43: #{oip_forward.3} parent=5 // pred_region
      %s525 = ssub.s32 %s10, 2
      // Predicated region
      $region45: #{oip_forward.3} parent=43 // pred_check
        %p526 = pneg %p163
      $region46: #{oip_forward.3} parent=43 // pred_check_branch
        %528 = sbr.rel (%p526) target = $region48
      $region47: #{oip_forward.3} parent=43 // pred_region
        %p529 = scmp.lt.s32.totalorder %s21, 1
        %s530 = scalar_select %p529, %s21, 1
        %p531 = scmp.lt.s32.totalorder %s22, 0
        %s532 = scalar_select %p531, %s22, 0
        %s533 = smul.addr %s532, 2
        %s534 = smul.addr %s530, 2
        %s535 = sadd.s32 %s533, %s534
        %s536 = smul.addr %s535, 4
        %s537 = scalar_lea.vmem %s4, %s536
      $region48: #{oip_forward.3} parent=43 // pred_fallthru
        _
    $region44: #{oip_forward.3} parent=5 // pred_fallthru
      _
  $region6: #{oip_forward.3} parent=0 // loop_footer
    %s14 = sadd.s32 1, %s10
  $region7: #{oip_forward.3} parent=0 // loop_footer_branch
    %9 = sbr.rel target = $region3
  $region8: #{oip_forward.3} parent=0 // loop_exit
    _

// kernel: oip_forward.2
$region0: #{oip_forward.2}
  #allocation0 [shape = 'u32[]', space=smem, size = 0x4, offset = 0x4, fixed_abs, tag = 'smem constant byte address 0x4 - core index']
  #allocation1 [shape = 'u32[144,128]{1,0:T(1,128)}', space=vmem, size = 0x12000, scoped, tag = 'internal scratch']
  %s0 = inlined_call_operand.vmem [shape: f32[2,4,16,16], index: 0, kind: input, shape index: {}]
  %s1 = inlined_call_operand.vmem [shape: bf16[64,4], index: 1, kind: input, shape index: {}]
  %s2 = inlined_call_operand.vmem [shape: f32[4,16,4], index: 2, kind: input, shape index: {}]
  %s3 = inlined_call_operand.vmem [shape: f32[2,16,4], index: 3, kind: output, shape index: {0}]
  %s4 = inlined_call_operand.vmem [shape: f32[2,16,4], index: 4, kind: output, shape index: {1}]
  %5 = xla_tuple %s3, %s4
  %s6 = sld [smem:[#allocation0]]
  $region69: #{oip_forward.2} parent=0
    _
  %s8 = ssub.s32 1, %s6
  %s9 = scalar_select 0, %s8, %s6
  loop: start=0, step=1, limit=4
  $region2: #{oip_forward.2} parent=0 // loop_pre_header
    _
  $region3: #{oip_forward.2} parent=0 // loop_header
    %s11 = sphi 0, %s15
    %p12 = scmp.ge.s32.totalorder %s11, 4
    %s18 = sphi 0, %s37
    %s19 = sphi 0, %s33
    %s20 = sphi 0, %s29
    %s21 = sphi 0, %s18
    %s22 = sphi 0, %s19
    %s23 = sphi 0, %s20
    %s24 = sphi 0, %s21
    %s25 = sphi 0, %s22
    %s26 = sphi 0, %s23
    %s44 = sphi 0, %s46
    %s47 = sphi 0, %s44
    %s48 = sphi 0, %s47
    %s64 = sphi 0, %s48
    %s70 = sphi 0, %s72
    %s73 = sphi 0, %s70
    %s74 = sphi 0, %s73
    %s90 = sphi 0, %s74
    %s98 = sphi 0, %s100
    %s101 = sphi 0, %s98
    %s102 = sphi 0, %s101
    %s118 = sphi 0, %s102
    %s126 = sphi 0, %s128
    %s129 = sphi 0, %s126
    %s130 = sphi 0, %s129
    %s146 = sphi 0, %s130
    %s152 = sphi 0, %s154
    %s155 = sphi 0, %s152
    %s156 = sphi 0, %s155
    %s172 = sphi 0, %s156
  $region4: #{oip_forward.2} parent=0 // loop_header_branch
    %14 = sbr.rel (%p12) target = $region8
  $region5: #{oip_forward.2} parent=0 // loop_body
    %s16 = ssub.s32 %s11, 1
    %s17 = ssub.s32 %s11, 2
    %s27 = sadd.s32 1, %s20
    %p28 = scmp.ge.s32.totalorder %s27, 1
    %s29 = scalar_select %p28, 0, %s27
    %s30 = sadd.s32 1, %s19
    %s31 = scalar_select %p28, %s30, %s19
    %p32 = scmp.ge.s32.totalorder %s31, 1
    %s33 = scalar_select %p32, 0, %s31
    %s34 = sadd.s32 1, %s18
    %s35 = scalar_select %p32, %s34, %s18
    %p36 = scmp.ge.s32.totalorder %s35, 2
    %s37 = scalar_select %p36, 0, %s35
    %s38 = ssub.s32 %s18, %s37
    %s39 = ssub.s32 %s20, %s29
    %s40 = sor.u32 %s38, %s39
    %s41 = ssub.s32 %s19, %s33
    %s42 = sor.u32 %s40, %s41
    %p43 = scmp.eq.s32.totalorder %s42, 0
    %s45 = sadd.s32 %s44, 1
    %s46 = scalar_select %p43, %s44, %s45
    %p49 = pneg %p43
    %p50 = scmp.eq.s32.totalorder %s11, 1
    %p51 = por %p49, %p50
    %p52 = scmp.ne.s32.totalorder %s44, %s47
    %p53 = scmp.eq.s32.totalorder %s11, 0
    %p54 = por %p52, %p53
    %p55 = scmp.ne.s32.totalorder %s44, %s47
    %p56 = scmp.eq.s32.totalorder %s16, 1
    %p57 = por %p55, %p56
    %p58 = scmp.ne.s32.totalorder %s47, %s48
    %p59 = scmp.eq.s32.totalorder %s16, 0
    %p60 = por %p58, %p59
    %p61 = scmp.ne.s32.totalorder %s47, %s48
    %p62 = scmp.eq.s32.totalorder %s17, 1
    %p63 = por %p61, %p62
    %p65 = scmp.ne.s32.totalorder %s48, %s64
    %p66 = scmp.eq.s32.totalorder %s17, 0
    %p67 = por %p65, %p66
    %s68 = ssub.s32 %s20, %s29
    %p69 = scmp.eq.s32.totalorder %s68, 0
    %s71 = sadd.s32 %s70, 1
    %s72 = scalar_select %p69, %s70, %s71
    %p75 = pneg %p69
    %p76 = scmp.eq.s32.totalorder %s11, 1
    %p77 = por %p75, %p76
    %p78 = scmp.ne.s32.totalorder %s70, %s73
    %p79 = scmp.eq.s32.totalorder %s11, 0
    %p80 = por %p78, %p79
    %p81 = scmp.ne.s32.totalorder %s70, %s73
    %p82 = scmp.eq.s32.totalorder %s16, 1
    %p83 = por %p81, %p82
    %p84 = scmp.ne.s32.totalorder %s73, %s74
    %p85 = scmp.eq.s32.totalorder %s16, 0
    %p86 = por %p84, %p85
    %p87 = scmp.ne.s32.totalorder %s73, %s74
    %p88 = scmp.eq.s32.totalorder %s17, 1
    %p89 = por %p87, %p88
    %p91 = scmp.ne.s32.totalorder %s74, %s90
    %p92 = scmp.eq.s32.totalorder %s17, 0
    %p93 = por %p91, %p92
    %s94 = ssub.s32 %s20, %s29
    %s95 = ssub.s32 %s19, %s33
    %s96 = sor.u32 %s94, %s95
    %p97 = scmp.eq.s32.totalorder %s96, 0
    %s99 = sadd.s32 %s98, 1
    %s100 = scalar_select %p97, %s98, %s99
    %p103 = pneg %p97
    %p104 = scmp.eq.s32.totalorder %s11, 1
    %p105 = por %p103, %p104
    %p106 = scmp.ne.s32.totalorder %s98, %s101
    %p107 = scmp.eq.s32.totalorder %s11, 0
    %p108 = por %p106, %p107
    %p109 = scmp.ne.s32.totalorder %s98, %s101
    %p110 = scmp.eq.s32.totalorder %s16, 1
    %p111 = por %p109, %p110
    %p112 = scmp.ne.s32.totalorder %s101, %s102
    %p113 = scmp.eq.s32.totalorder %s16, 0
    %p114 = por %p112, %p113
    %p115 = scmp.ne.s32.totalorder %s101, %s102
    %p116 = scmp.eq.s32.totalorder %s17, 1
    %p117 = por %p115, %p116
    %p119 = scmp.ne.s32.totalorder %s102, %s118
    %p120 = scmp.eq.s32.totalorder %s17, 0
    %p121 = por %p119, %p120
    %s122 = ssub.s32 %s18, %s37
    %s123 = ssub.s32 %s19, %s33
    %s124 = sor.u32 %s122, %s123
    %p125 = scmp.eq.s32.totalorder %s124, 0
    %s127 = sadd.s32 %s126, 1
    %s128 = scalar_select %p125, %s126, %s127
    %p131 = pneg %p125
    %p132 = scmp.eq.s32.totalorder %s11, 1
    %p133 = por %p131, %p132
    %p134 = scmp.ne.s32.totalorder %s126, %s129
    %p135 = scmp.eq.s32.totalorder %s11, 0
    %p136 = por %p134, %p135
    %p137 = scmp.ne.s32.totalorder %s126, %s129
    %p138 = scmp.eq.s32.totalorder %s16, 1
    %p139 = por %p137, %p138
    %p140 = scmp.ne.s32.totalorder %s129, %s130
    %p141 = scmp.eq.s32.totalorder %s16, 0
    %p142 = por %p140, %p141
    %p143 = scmp.ne.s32.totalorder %s129, %s130
    %p144 = scmp.eq.s32.totalorder %s17, 1
    %p145 = por %p143, %p144
    %p147 = scmp.ne.s32.totalorder %s130, %s146
    %p148 = scmp.eq.s32.totalorder %s17, 0
    %p149 = por %p147, %p148
    %s150 = ssub.s32 %s18, %s37
    %p151 = scmp.eq.s32.totalorder %s150, 0
    %s153 = sadd.s32 %s152, 1
    %s154 = scalar_select %p151, %s152, %s153
    %p157 = pneg %p151
    %p158 = scmp.eq.s32.totalorder %s11, 1
    %p159 = por %p157, %p158
    %p160 = scmp.ne.s32.totalorder %s152, %s155
    %p161 = scmp.eq.s32.totalorder %s11, 0
    %p162 = por %p160, %p161
    %p163 = scmp.ne.s32.totalorder %s152, %s155
    %p164 = scmp.eq.s32.totalorder %s16, 1
    %p165 = por %p163, %p164
    %p166 = scmp.ne.s32.totalorder %s155, %s156
    %p167 = scmp.eq.s32.totalorder %s16, 0
    %p168 = por %p166, %p167
    %p169 = scmp.ne.s32.totalorder %s155, %s156
    %p170 = scmp.eq.s32.totalorder %s17, 1
    %p171 = por %p169, %p170
    %p173 = scmp.ne.s32.totalorder %s156, %s172
    %p174 = scmp.eq.s32.totalorder %s17, 0
    %p175 = por %p173, %p174
    %p176 = scmp.le.s32.totalorder 1, %s11
    %p177 = scmp.lt.s32.totalorder %s11, 3
    %p178 = pnand %p176, %p177
    %p179 = pneg %p178
    // Predicated region
    $region9: #{oip_forward.2} parent=5 // pred_check
      _
    $region10: #{oip_forward.2} parent=5 // pred_check_branch
      %181 = sbr.rel (%p178) target = $region12
    $region11: #{oip_forward.2} parent=5 // pred_region
      %s182 = ssub.s32 %s11, 1
      // Predicated region
      $region13: #{oip_forward.2} parent=11 // pred_check
        %p183 = pneg %p86
      $region14: #{oip_forward.2} parent=11 // pred_check_branch
        %185 = sbr.rel (%p183) target = $region16
      $region15: #{oip_forward.2} parent=11 // pred_region
        %s186 = smul.u32 8, %s23
        %p187 = scmp.lt.s32.totalorder %s186, 7
        %s188 = scalar_select %p187, %s186, 7
        %s189 = smul.addr %s188, 4
        %s190 = scalar_lea.vmem %s1, %s189
        %s191 = smul.u32 8, %s23
      $region16: #{oip_forward.2} parent=11 // pred_fallthru
        _
      // Predicated region
      $region17: #{oip_forward.2} parent=11 // pred_check
        %p192 = pneg %p114
      $region18: #{oip_forward.2} parent=11 // pred_check_branch
        %194 = sbr.rel (%p192) target = $region20
      $region19: #{oip_forward.2} parent=11 // pred_region
        %s195 = smul.u32 4, %s23
        %s196 = smul.u32 2, %s22
        %p197 = scmp.lt.s32.totalorder %s195, 3
        %s198 = scalar_select %p197, %s195, 3
        %p199 = scmp.lt.s32.totalorder %s196, 1
        %s200 = scalar_select %p199, %s196, 1
        %s201 = smul.addr %s198, 2
        %s202 = sadd.s32 %s200, %s201
        %s203 = smul.addr %s202, 8
        %s204 = scalar_lea.vmem %s2, %s203
        %s205 = smul.u32 4, %s23
        %s206 = smul.u32 2, %s22
      $region20: #{oip_forward.2} parent=11 // pred_fallthru
        _
    $region12: #{oip_forward.2} parent=5 // pred_fallthru
      _
    %p207 = scmp.lt.s32.totalorder %s11, 2
    // Predicated region
    $region21: #{oip_forward.2} parent=5 // pred_check
      %p208 = pneg %p207
    $region22: #{oip_forward.2} parent=5 // pred_check_branch
      %210 = sbr.rel (%p208) target = $region24
    $region23: #{oip_forward.2} parent=5 // pred_region
      // Predicated region
      $region25: #{oip_forward.2} parent=23 // pred_check
        %p211 = pneg %p54
      $region26: #{oip_forward.2} parent=23 // pred_check_branch
        %213 = sbr.rel (%p211) target = $region28
      $region27: #{oip_forward.2} parent=23 // pred_region
        %s214 = smul.u32 4, %s20
        %s215 = smul.u32 2, %s19
        %p216 = scmp.lt.s32.totalorder %s18, 1
        %s217 = scalar_select %p216, %s18, 1
        %p218 = scmp.lt.s32.totalorder %s214, 3
        %s219 = scalar_select %p218, %s214, 3
        %p220 = scmp.lt.s32.totalorder %s215, 1
        %s221 = scalar_select %p220, %s215, 1
        %s222 = smul.addr %s219, 2
        %s223 = sadd.s32 %s221, %s222
        %s224 = smul.addr %s217, 8
        %s225 = sadd.s32 %s223, %s224
        %s226 = smul.addr %s225, 8
        %s227 = scalar_lea.vmem %s0, %s226
        %s228 = smul.u32 4, %s20
        %s229 = smul.u32 2, %s19
      $region28: #{oip_forward.2} parent=23 // pred_fallthru
        _
    $region24: #{oip_forward.2} parent=5 // pred_fallthru
      _
    %p230 = scmp.le.s32.totalorder 1, %s11
    %p231 = scmp.lt.s32.totalorder %s11, 3
    %p232 = pnand %p230, %p231
    %p233 = pneg %p232
    // Predicated region
    $region29: #{oip_forward.2} parent=5 // pred_check
      _
    $region30: #{oip_forward.2} parent=5 // pred_check_branch
      %235 = sbr.rel (%p232) target = $region32
    $region31: #{oip_forward.2} parent=5 // pred_region
      %s236 = ssub.s32 %s11, 1
      %s237 = smul.u32 4, %s23
      %s238 = smul.u32 2, %s22
      %p239 = scmp.lt.s32.totalorder %s21, 1
      %s240 = scalar_select %p239, %s21, 1
      %p241 = scmp.lt.s32.totalorder %s237, 3
      %s242 = scalar_select %p241, %s237, 3
      %p243 = scmp.lt.s32.totalorder %s238, 1
      %s244 = scalar_select %p243, %s238, 1
      %s245 = smul.addr %s242, 2
      %s246 = sadd.s32 %s244, %s245
      %s247 = smul.addr %s240, 8
      %s248 = sadd.s32 %s246, %s247
      %s249 = smul.addr %s248, 8
      %s250 = scalar_lea.vmem %s0, %s249
      %p251 = pneg %p60
      %p252 = pneg %p57
      %s253 = smul.u32 8, %s23
      %p254 = scmp.lt.s32.totalorder %s253, 7
      %s255 = scalar_select %p254, %s253, 7
      %s256 = smul.addr %s255, 4
      %s257 = scalar_lea.vmem %s1, %s256
      %p258 = pneg %p86
      %p259 = pneg %p83
      %s260 = smul.u32 4, %s23
      %s261 = smul.u32 2, %s22
      %p262 = scmp.lt.s32.totalorder %s260, 3
      %s263 = scalar_select %p262, %s260, 3
      %p264 = scmp.lt.s32.totalorder %s261, 1
      %s265 = scalar_select %p264, %s261, 1
      %s266 = smul.addr %s263, 2
      %s267 = sadd.s32 %s265, %s266
      %s268 = smul.addr %s267, 8
      %s269 = scalar_lea.vmem %s2, %s268
      %p270 = pneg %p114
      %p271 = pneg %p111
      %p272 = pneg %p142
      %p273 = pneg %p139
      %s274 = smul.u32 2, %s22
      %p275 = scmp.lt.s32.totalorder %s21, 1
      %s276 = scalar_select %p275, %s21, 1
      %p277 = scmp.lt.s32.totalorder %s274, 1
      %s278 = scalar_select %p277, %s274, 1
      %s279 = smul.addr %s276, 2
      %s280 = sadd.s32 %s278, %s279
      %s281 = smul.addr %s280, 8
      %s282 = scalar_lea.vmem %s3, %s281
      %p283 = pneg %p168
      %p284 = pneg %p165
      %p285 = scmp.lt.s32.totalorder %s21, 1
      %s286 = scalar_select %p285, %s21, 1
      %s287 = smul.addr %s286, 2
      %s288 = smul.addr %s287, 8
      %s289 = scalar_lea.vmem %s4, %s288
      %s290 = smul.u32 4, %s23
      %s291 = smul.u32 2, %s22
      %p292 = scmp.lt.s32.totalorder %s21, 1
      %s293 = scalar_select %p292, %s21, 1
      %p294 = scmp.lt.s32.totalorder %s290, 3
      %s295 = scalar_select %p294, %s290, 3
      %p296 = scmp.lt.s32.totalorder %s291, 1
      %s297 = scalar_select %p296, %s291, 1
      %s298 = smul.addr %s295, 2
      %s299 = sadd.s32 %s297, %s298
      %s300 = smul.addr %s293, 8
      %s301 = sadd.s32 %s299, %s300
      %s302 = smul.addr %s301, 8
      %s303 = scalar_lea.vmem %s0, %s302
      %s304 = smul.u32 4, %s23
      %s305 = smul.u32 2, %s22
      %s306 = smul.u32 8, %s23
      %p307 = scmp.lt.s32.totalorder %s306, 7
      %s308 = scalar_select %p307, %s306, 7
      %s309 = smul.addr %s308, 4
      %s310 = scalar_lea.vmem %s1, %s309
      %s311 = smul.u32 8, %s23
      %s312 = smul.u32 4, %s23
      %s313 = smul.u32 2, %s22
      %p314 = scmp.lt.s32.totalorder %s312, 3
      %s315 = scalar_select %p314, %s312, 3
      %p316 = scmp.lt.s32.totalorder %s313, 1
      %s317 = scalar_select %p316, %s313, 1
      %s318 = smul.addr %s315, 2
      %s319 = sadd.s32 %s317, %s318
      %s320 = smul.addr %s319, 8
      %s321 = scalar_lea.vmem %s2, %s320
      %s322 = smul.u32 4, %s23
      %s323 = smul.u32 2, %s22
      %s324 = smul.u32 2, %s22
      %p325 = scmp.lt.s32.totalorder %s21, 1
      %s326 = scalar_select %p325, %s21, 1
      %p327 = scmp.lt.s32.totalorder %s324, 1
      %s328 = scalar_select %p327, %s324, 1
      %s329 = smul.addr %s326, 2
      %s330 = sadd.s32 %s328, %s329
      %s331 = smul.addr %s330, 8
      %s332 = scalar_lea.vmem %s3, %s331
      %s333 = smul.u32 2, %s22
      %p334 = scmp.lt.s32.totalorder %s21, 1
      %s335 = scalar_select %p334, %s21, 1
      %s336 = smul.addr %s335, 2
      %s337 = smul.addr %s336, 8
      %s338 = scalar_lea.vmem %s4, %s337
      %v340 = vld [vmem:[%s303] sm:$0xff]
      %v341 = vld [vmem:[%s303 + $0x8] sm:$0xff]
      %v342 = vld [vmem:[%s303 + $0x10] sm:$0xff]
      %v343 = vld [vmem:[%s303 + $0x18] sm:$0xff]
      %v344 = vld [vmem:[%s303 + $0x20] sm:$0xff]
      %v345 = vld [vmem:[%s303 + $0x28] sm:$0xff]
      %v346 = vld [vmem:[%s303 + $0x30] sm:$0xff]
      %v347 = vld [vmem:[%s303 + $0x38] sm:$0xff]
      %v348 = vpack.c.bf16 %v341, %v340
      %v349 = vpack.c.bf16 %v343, %v342
      %v350 = vpack.c.bf16 %v345, %v344
      %v351 = vpack.c.bf16 %v347, %v346
      %v352 = vld [vmem:[%s321] sm:$0xff]
      %v353 = vld [vmem:[%s321 + $0x8] sm:$0xff]
      %v354 = vld [vmem:[%s321 + $0x10] sm:$0xff]
      %v355 = vld [vmem:[%s321 + $0x18] sm:$0xff]
      %v356 = vld [vmem:[%s321 + $0x20] sm:$0xff]
      %v357 = vld [vmem:[%s321 + $0x28] sm:$0xff]
      %v358 = vld [vmem:[%s321 + $0x30] sm:$0xff]
      %v359 = vld [vmem:[%s321 + $0x38] sm:$0xff]
      %v360 = vpack.c.bf16 %v353, %v352
      %v361 = vpack.c.bf16 %v355, %v354
      %v362 = vpack.c.bf16 %v357, %v356
      %v363 = vpack.c.bf16 %v359, %v358
      %364 = vxpose.xlu0.c.b16.start [1/8] %v348, 128
      %365 = vxpose.xlu0.c.b16.cont [2/8] %v349, 128
      %366 = vxpose.xlu0.c.b16.cont [3/8] %v350, 128
      %367 = vxpose.xlu0.c.b16.cont [4/8] %v351, 128
      %368 = vxpose.xlu0.c.b16.cont [5/8] 0, 128
      %369 = vxpose.xlu0.c.b16.cont [6/8] 0, 128
      %370 = vxpose.xlu0.c.b16.cont [7/8] 0, 128
      %371 = vxpose.xlu0.c.b16.end [8/8] 0, 128
      %v372 = vpop.trf.xlu0
      %v373 = vpop.trf.xlu0
      %v374 = vpop.trf.xlu0
      %v375 = vpop.trf.xlu0
      %v376 = vpop.trf.xlu0
      %v377 = vpop.trf.xlu0
      %v378 = vpop.trf.xlu0
      %v379 = vpop.trf.xlu0
      %vm380 = vcmask 523264
      %v382 = vsel %vm380, %v372, 0
      %384 = vmatprep.subr.bf16.mxu0 0
      %385 = vmatpush1.bf16.msra.mxu0 0
      %386 = vmatprep.subr.bf16.mxu0 0
      %387 = vmatpush1.bf16.msra.mxu0 0
      %388 = vmatprep.subr.bf16.mxu0 0
      %389 = vmatpush1.bf16.msra.mxu0 0
      %390 = vmatprep.subr.bf16.mxu0 0
      %391 = vmatpush1.bf16.msra.mxu0 0
      %392 = vmatprep.subr.bf16.mxu0 0
      %393 = vmatpush1.bf16.msra.mxu0 %v363
      %394 = vmatprep.subr.bf16.mxu0 0
      %395 = vmatpush1.bf16.msra.mxu0 %v362
      %396 = vmatprep.subr.bf16.mxu0 0
      %397 = vmatpush1.bf16.msra.mxu0 %v361
      %398 = vmatprep.subr.bf16.mxu0 0
      %399 = vmatpush1.bf16.msra.mxu0 %v360
      %400 = vmatprep.subr.bf16.mxu0 0
      %401 = vmatpush2.bf16.msra.mxu0 0
      %402 = vmatprep.subr.bf16.mxu0 0
      %403 = vmatpush2.bf16.msra.mxu0 0
      %404 = vmatprep.subr.bf16.mxu0 0
      %405 = vmatpush2.bf16.msra.mxu0 0
      %406 = vmatprep.subr.bf16.mxu0 0
      %407 = vmatpush2.bf16.msra.mxu0 0
      %408 = vmatprep.subr.bf16.mxu0 0
      %409 = vmatpush2.bf16.msra.mxu0 0
      %410 = vmatprep.subr.bf16.mxu0 0
      %411 = vmatpush2.bf16.msra.mxu0 0
      %412 = vmatprep.subr.bf16.mxu0 0
      %413 = vmatpush2.bf16.msra.mxu0 0
      %414 = vmatprep.subr.bf16.mxu0 0
      %415 = vmatpush2.bf16.msra.mxu0 0
      %416 = vmatprep.mubr.bf16.mxu0 0
      %417 = vmatmul.mubr.bf16.gmra.mxu0 %v382
      %v418 = vpop.f32.mrf.mxu0
      %v419 = vadd.f32 0.0, %v418
      %v420 = vpop.f32.mrf.mxu0
      %v421 = vpop.f32.mrf.mxu0
      %v422 = vadd.f32 0.0, %v421
      %v423 = vpop.f32.mrf.mxu0
      %424 = vdwg.mxu0
      %427 = vrot.lane.b32.xlu0 %v342, 16
      %v428 = vpop.permute.xlu0 %427
      %429 = vrot.lane.b32.xlu0 %v343, 16
      %v430 = vpop.permute.xlu0 %429
      %435 = vrot.lane.b32.xlu0 %v344, 32
      %v436 = vpop.permute.xlu0 %435
      %437 = vrot.lane.b32.xlu0 %v345, 32
      %v438 = vpop.permute.xlu0 %437
      %443 = vrot.lane.b32.xlu0 %v346, 48
      %v444 = vpop.permute.xlu0 %443
      %445 = vrot.lane.b32.xlu0 %v347, 48
      %v446 = vpop.permute.xlu0 %445
      %vm449 = vcmask 130048
      %v450 = vsel %vm449, %v340, %v428
      %v451 = vsel %vm449, %v341, %v430
      %vm452 = vcmask 261120
      %v453 = vsel %vm452, %v450, %v436
      %v454 = vsel %vm452, %v451, %v438
      %vm455 = vcmask 392192
      %v456 = vsel %vm455, %v453, %v444
      %v457 = vsel %vm455, %v454, %v446
      %v458 = vpack.c.bf16 %v457, %v456
      %v459 = vld [vmem:[%s310] sm:$0xf]
      %v460 = vld [vmem:[%s310 + $0x4] sm:$0xf]
      %v461 = vld [vmem:[%s310 + $0x8] sm:$0xf]
      %v462 = vld [vmem:[%s310 + $0xc] sm:$0xf]
      %v463 = vld [vmem:[%s310 + $0x10] sm:$0xf]
      %v464 = vld [vmem:[%s310 + $0x14] sm:$0xf]
      %v465 = vld [vmem:[%s310 + $0x18] sm:$0xf]
      %v466 = vld [vmem:[%s310 + $0x1c] sm:$0xf]
      %v475 = vunpack.c.l.b16 %v459
      %v476 = vunpack.c.l.b16 %v460
      %v477 = vunpack.c.l.b16 %v461
      %v478 = vunpack.c.l.b16 %v462
      %v479 = vunpack.c.l.b16 %v463
      %v480 = vunpack.c.l.b16 %v464
      %v481 = vunpack.c.l.b16 %v465
      %v482 = vunpack.c.l.b16 %v466
      %v483 = vpack.c.b16 %v476, %v475
      %v484 = vpack.c.b16 %v478, %v477
      %v485 = vpack.c.b16 %v480, %v479
      %v486 = vpack.c.b16 %v482, %v481
      %v492 = vsel %vm380, %v458, 0
      %494 = vmatprep.subr.bf16.mxu0 0
      %495 = vmatpush1.bf16.msra.mxu0 0
      %496 = vmatprep.subr.bf16.mxu0 0
      %497 = vmatpush1.bf16.msra.mxu0 0
      %498 = vmatprep.subr.bf16.mxu0 0
      %499 = vmatpush1.bf16.msra.mxu0 0
      %500 = vmatprep.subr.bf16.mxu0 0
      %501 = vmatpush1.bf16.msra.mxu0 0
      %502 = vmatprep.subr.bf16.mxu0 0
      %503 = vmatpush1.bf16.msra.mxu0 %v486
      %504 = vmatprep.subr.bf16.mxu0 0
      %505 = vmatpush1.bf16.msra.mxu0 %v485
      %506 = vmatprep.subr.bf16.mxu0 0
      %507 = vmatpush1.bf16.msra.mxu0 %v484
      %508 = vmatprep.subr.bf16.mxu0 0
      %509 = vmatpush1.bf16.msra.mxu0 %v483
      %510 = vmatprep.subr.bf16.mxu0 0
      %511 = vmatpush2.bf16.msra.mxu0 0
      %512 = vmatprep.subr.bf16.mxu0 0
      %513 = vmatpush2.bf16.msra.mxu0 0
      %514 = vmatprep.subr.bf16.mxu0 0
      %515 = vmatpush2.bf16.msra.mxu0 0
      %516 = vmatprep.subr.bf16.mxu0 0
      %517 = vmatpush2.bf16.msra.mxu0 0
      %518 = vmatprep.subr.bf16.mxu0 0
      %519 = vmatpush2.bf16.msra.mxu0 0
      %520 = vmatprep.subr.bf16.mxu0 0
      %521 = vmatpush2.bf16.msra.mxu0 0
      %522 = vmatprep.subr.bf16.mxu0 0
      %523 = vmatpush2.bf16.msra.mxu0 0
      %524 = vmatprep.subr.bf16.mxu0 0
      %525 = vmatpush2.bf16.msra.mxu0 0
      %526 = vmatprep.mubr.bf16.mxu0 0
      %527 = vmatmul.mubr.bf16.gmra.mxu0 %v492
      %v528 = vpop.f32.mrf.mxu0
      %v529 = vadd.f32 0.0, %v528
      %v530 = vpop.f32.mrf.mxu0
      %v531 = vpop.f32.mrf.mxu0
      %v532 = vadd.f32 0.0, %v531
      %v533 = vpop.f32.mrf.mxu0
      %534 = vdwg.mxu0
      %p535 = scmp.eq.s32.totalorder %s23, 0
      // Predicated region
      $region33: #{oip_forward.2} parent=31 // pred_check
        %p536 = pneg %p535
      $region34: #{oip_forward.2} parent=31 // pred_check_branch
        %538 = sbr.rel (%p536) target = $region36
      $region35: #{oip_forward.2} parent=31 // pred_region
        %vm539 = vcmask 31744
        %540 = vst.msk [vmem:[%s332] sm:$0xff] %vm539, %v529
        %541 = vst.msk [vmem:[%s332 + $0x8] sm:$0xff] %vm539, %v532
      $region36: #{oip_forward.2} parent=31 // pred_fallthru
        _
      %p542 = scmp.gt.s32.totalorder %s23, 0
      // Predicated region
      $region37: #{oip_forward.2} parent=31 // pred_check
        %p543 = pneg %p542
      $region38: #{oip_forward.2} parent=31 // pred_check_branch
        %545 = sbr.rel (%p543) target = $region40
      $region39: #{oip_forward.2} parent=31 // pred_region
        %v546 = vld [vmem:[%s332] sm:$0xff]
        %v547 = vld [vmem:[%s332 + $0x8] sm:$0xff]
        %v548 = vadd.f32 %v546, %v529
        %v549 = vadd.f32 %v547, %v532
        %vm550 = vcmask 31744
        %551 = vst.msk [vmem:[%s332] sm:$0xff] %vm550, %v548
        %552 = vst.msk [vmem:[%s332 + $0x8] sm:$0xff] %vm550, %v549
      $region40: #{oip_forward.2} parent=31 // pred_fallthru
        _
      %p553 = scmp.eq.s32.totalorder %s22, 0
      %p554 = pnand %p553, %p535
      %p555 = pneg %p554
      // Predicated region
      $region41: #{oip_forward.2} parent=31 // pred_check
        _
      $region42: #{oip_forward.2} parent=31 // pred_check_branch
        %557 = sbr.rel (%p554) target = $region44
      $region43: #{oip_forward.2} parent=31 // pred_region
        %vm558 = vcmask 31744
        %559 = vst.msk [vmem:[%s338] sm:$0xff] %vm558, %v419
        %560 = vst.msk [vmem:[%s338 + $0x8] sm:$0xff] %vm558, %v422
      $region44: #{oip_forward.2} parent=31 // pred_fallthru
        _
      %p561 = pneg %p555
      // Predicated region
      $region45: #{oip_forward.2} parent=31 // pred_check
        _
      $region46: #{oip_forward.2} parent=31 // pred_check_branch
        %563 = sbr.rel (%p555) target = $region48
      $region47: #{oip_forward.2} parent=31 // pred_region
        %v564 = vld [vmem:[%s338] sm:$0xff]
        %v565 = vld [vmem:[%s338 + $0x8] sm:$0xff]
        %v566 = vadd.f32 %v564, %v419
        %v567 = vadd.f32 %v565, %v422
        %vm568 = vcmask 31744
        %569 = vst.msk [vmem:[%s338] sm:$0xff] %vm568, %v566
        %570 = vst.msk [vmem:[%s338 + $0x8] sm:$0xff] %vm568, %v567
      $region48: #{oip_forward.2} parent=31 // pred_fallthru
        _
      %s571 = smul.u32 2, %s22
      %p572 = scmp.lt.s32.totalorder %s21, 1
      %s573 = scalar_select %p572, %s21, 1
      %p574 = scmp.lt.s32.totalorder %s571, 1
      %s575 = scalar_select %p574, %s571, 1
      %s576 = smul.addr %s573, 2
      %s577 = sadd.s32 %s575, %s576
      %s578 = smul.addr %s577, 8
      %s579 = scalar_lea.vmem %s3, %s578
      %p580 = scmp.lt.s32.totalorder %s21, 1
      %s581 = scalar_select %p580, %s21, 1
      %s582 = smul.addr %s581, 2
      %s583 = smul.addr %s582, 8
      %s584 = scalar_lea.vmem %s4, %s583
      // Predicated region
      $region49: #{oip_forward.2} parent=31 // pred_check
        %p585 = pneg %p139
      $region50: #{oip_forward.2} parent=31 // pred_check_branch
        %587 = sbr.rel (%p585) target = $region52
      $region51: #{oip_forward.2} parent=31 // pred_region
        %s588 = smul.u32 2, %s22
      $region52: #{oip_forward.2} parent=31 // pred_fallthru
        _
      // Predicated region
      $region53: #{oip_forward.2} parent=31 // pred_check
        %p589 = pneg %p165
      $region54: #{oip_forward.2} parent=31 // pred_check_branch
        %591 = sbr.rel (%p589) target = $region56
      $region55: #{oip_forward.2} parent=31 // pred_region
        _
      $region56: #{oip_forward.2} parent=31 // pred_fallthru
        _
    $region32: #{oip_forward.2} parent=5 // pred_fallthru
      _
    %p592 = scmp.le.s32.totalorder 2, %s11
    // Predicated region
    $region57: #{oip_forward.2} parent=5 // pred_check
      %p593 = pneg %p592
    $region58: #{oip_forward.2} parent=5 // pred_check_branch
      %595 = sbr.rel (%p593) target = $region60
    $region59: #{oip_forward.2} parent=5 // pred_region
      %s596 = ssub.s32 %s11, 2
      // Predicated region
      $region61: #{oip_forward.2} parent=59 // pred_check
        %p597 = pneg %p145
      $region62: #{oip_forward.2} parent=59 // pred_check_branch
        %599 = sbr.rel (%p597) target = $region64
      $region63: #{oip_forward.2} parent=59 // pred_region
        %s600 = smul.u32 2, %s25
        %p601 = scmp.lt.s32.totalorder %s24, 1
        %s602 = scalar_select %p601, %s24, 1
        %p603 = scmp.lt.s32.totalorder %s600, 1
        %s604 = scalar_select %p603, %s600, 1
        %s605 = smul.addr %s602, 2
        %s606 = sadd.s32 %s604, %s605
        %s607 = smul.addr %s606, 8
        %s608 = scalar_lea.vmem %s3, %s607
      $region64: #{oip_forward.2} parent=59 // pred_fallthru
        _
      // Predicated region
      $region65: #{oip_forward.2} parent=59 // pred_check
        %p609 = pneg %p171
      $region66: #{oip_forward.2} parent=59 // pred_check_branch
        %611 = sbr.rel (%p609) target = $region68
      $region67: #{oip_forward.2} parent=59 // pred_region
        %p612 = scmp.lt.s32.totalorder %s24, 1
        %s613 = scalar_select %p612, %s24, 1
        %s614 = smul.addr %s613, 2
        %s615 = smul.addr %s614, 8
        %s616 = scalar_lea.vmem %s4, %s615
      $region68: #{oip_forward.2} parent=59 // pred_fallthru
        _
    $region60: #{oip_forward.2} parent=5 // pred_fallthru
      _
  $region6: #{oip_forward.2} parent=0 // loop_footer
    %s15 = sadd.s32 1, %s11
  $region7: #{oip_forward.2} parent=0 // loop_footer_branch
    %10 = sbr.rel target = $region3
  $region8: #{oip_forward.2} parent=0 // loop_exit
    _

</llo_original>
